<compile_context>
chip_gen: v6e
topology: v6e:2x2x1
jax: 0.10.0
libtpu: 0.0.40
codegen_flags: <defaults>
</compile_context>

<pallas_src>
import jax
import jax.numpy as jnp
from jax.experimental import pallas as pl
from jax.experimental.pallas import tpu as pltpu


def _ffn_kernel(x_ref, w1_ref, b1_ref, w2_ref, b2_ref, o_ref, acc_ref):
    """One (row-tile i, hidden-chunk k) grid step of the ReLU MLP."""
    k = pl.program_id(1)

    @pl.when(k == 0)
    def _init():
        acc_ref[...] = jnp.zeros_like(acc_ref)

    # First linear on this hidden chunk: bf16 x bf16 -> f32 on the MXU,
    # bias + ReLU in f32 (epilogue is VPU work hidden under MXU time).
    h = jnp.dot(x_ref[...], w1_ref[...], preferred_element_type=jnp.float32)
    h = jnp.maximum(h + b1_ref[...], 0.0)

    # Second linear: accumulate this chunk's contribution in the f32 scratch.
    # (Post-ReLU activation is downcast to bf16 for the MXU; standard practice.)
    acc_ref[...] += jnp.dot(h.astype(w2_ref.dtype), w2_ref[...],
                            preferred_element_type=jnp.float32)

    @pl.when(k == pl.num_programs(1) - 1)
    def _finalize():
        o_ref[...] = (acc_ref[...] + b2_ref[...]).astype(o_ref.dtype)


def _round_up(x, m):
    return ((x + m - 1) // m) * m


def _pick_hidden_tile(h, target, align=128):
    """Largest multiple of `align` that divides h and is <= target (else h)."""
    t = (min(target, h) // align) * align
    while t >= align:
        if h % t == 0:
            return t
        t -= align
    return h


def feed_forward(x, w1, b1, w2, b2, *, tm=256, th=512,
                 compute_dtype=jnp.bfloat16):
    """x: (..., C); w1: (C, 4C); b1: (4C,); w2: (4C, C); b2: (C,)."""
    orig_shape = x.shape
    C = orig_shape[-1]
    H = w1.shape[1]
    assert w1.shape == (C, H) and w2.shape == (H, C)
    out_dtype = x.dtype

    x2d = x.reshape(-1, C)
    M = x2d.shape[0]

    # Row tile: as large as requested, but never forces a tiny tile for
    # divisibility -- pad rows to a multiple of the tile instead.
    tm_eff = min(tm, _round_up(M, 8))
    m_pad = _round_up(M, tm_eff)
    if m_pad != M:
        x2d = jnp.pad(x2d, ((0, m_pad - M), (0, 0)))

    th_eff = _pick_hidden_tile(H, th)
    grid = (m_pad // tm_eff, H // th_eff)

    # bf16 matmul operands (MXU-native); biases stay f32 for the epilogue.
    xc = x2d.astype(compute_dtype)
    w1c = w1.astype(compute_dtype)
    w2c = w2.astype(compute_dtype)
    b1_2d = b1.reshape(1, H).astype(jnp.float32)
    b2_2d = b2.reshape(1, C).astype(jnp.float32)

    c_bytes = jnp.dtype(compute_dtype).itemsize
    o_bytes = jnp.dtype(out_dtype).itemsize
    # Double-buffered input/output tiles + f32 accumulator scratch.
    vmem_need = (2 * tm_eff * C * c_bytes          # x tile
                 + 2 * C * th_eff * c_bytes        # W1 chunk
                 + 2 * th_eff * C * c_bytes        # W2 chunk
                 + 2 * (th_eff + C) * 4            # bias chunks (f32)
                 + 2 * tm_eff * C * o_bytes        # out tile
                 + tm_eff * C * 4)                 # accumulator
    vmem_limit = int(min(64 * 1024 * 1024,
                         max(32 * 1024 * 1024,
                             int(1.5 * vmem_need) + (4 << 20))))

    cost = pl.CostEstimate(
        flops=4 * m_pad * C * H,      # two matmuls
        transcendentals=0,
        bytes_accessed=(xc.size * c_bytes + w1c.size * c_bytes
                        + w2c.size * c_bytes + (H + C) * 4
                        + m_pad * C * o_bytes),
    )

    out = pl.pallas_call(
        _ffn_kernel,
        out_shape=jax.ShapeDtypeStruct((m_pad, C), out_dtype),
        grid_spec=pltpu.PrefetchScalarGridSpec(
            num_scalar_prefetch=0,
            grid=grid,
            in_specs=[
                pl.BlockSpec((tm_eff, C), lambda i, k: (i, 0)),   # x rows
                pl.BlockSpec((C, th_eff), lambda i, k: (0, k)),   # W1 chunk
                pl.BlockSpec((1, th_eff), lambda i, k: (0, k)),   # b1 chunk
                pl.BlockSpec((th_eff, C), lambda i, k: (k, 0)),   # W2 chunk
                pl.BlockSpec((1, C), lambda i, k: (0, 0)),        # b2
            ],
            out_specs=pl.BlockSpec((tm_eff, C), lambda i, k: (i, 0)),
            scratch_shapes=[pltpu.VMEM((tm_eff, C), jnp.float32)],
        ),
        compiler_params=pltpu.CompilerParams(
            dimension_semantics=("parallel", "arbitrary"),
            vmem_limit_bytes=vmem_limit,
        ),
        cost_estimate=cost,
    )(xc, w1c, b1_2d, w2c, b2_2d)

    if m_pad != M:
        out = out[:M]
    return out.reshape(orig_shape)


if __name__ == "__main__":
    # Small shapes consistent with the module (n_embd = 384, 4x expansion MLP).
    B, T, C = 2, 8, 384
    H = 4 * C

    key = jax.random.PRNGKey(0)
    kx, kw1, kb1, kw2, kb2 = jax.random.split(key, 5)

    x = jax.random.normal(kx, (B, T, C), dtype=jnp.float32)
    # PyTorch Linear stores W as (out, in); the kernel takes the (in, out)
    # transpose.
    w1 = jax.random.normal(kw1, (C, H), dtype=jnp.float32) / jnp.sqrt(C)
    b1 = jax.random.normal(kb1, (H,), dtype=jnp.float32) * 0.01
    w2 = jax.random.normal(kw2, (H, C), dtype=jnp.float32) / jnp.sqrt(H)
    b2 = jax.random.normal(kb2, (C,), dtype=jnp.float32) * 0.01

    out = feed_forward(x, w1, b1, w2, b2)
    out = jax.block_until_ready(out)

    # Pure-JAX reference mirroring the kernel's bf16 matmul operands with f32
    # accumulation (eval-mode forward: dropout = identity).
    f32 = jnp.float32
    xb = x.astype(jnp.bfloat16).astype(f32)
    w1b = w1.astype(jnp.bfloat16).astype(f32)
    w2b = w2.astype(jnp.bfloat16).astype(f32)
    h_ref = jnp.maximum(
        jnp.dot(xb, w1b, precision=jax.lax.Precision.HIGHEST) + b1, 0.0)
    ref = jnp.dot(h_ref.astype(jnp.bfloat16).astype(f32), w2b,
                  precision=jax.lax.Precision.HIGHEST) + b2

    assert out.shape == x.shape
    max_err = float(jnp.max(jnp.abs(out - ref)))
    assert jnp.allclose(out, ref, atol=2e-2, rtol=2e-2), \
        f"mismatch vs reference (max abs err = {max_err})"

    print("KERNEL_OK")
</pallas_src>

<mosaic_0001>
module attributes {stable_mosaic.version = 11 : i64} {
  func.func @_ffn_kernel(%arg0: i32, %arg1: i32, %arg2: memref<16x384xbf16, #tpu.memory_space<vmem>>, %arg3: memref<384x512xbf16, #tpu.memory_space<vmem>>, %arg4: memref<1x512xf32, #tpu.memory_space<vmem>>, %arg5: memref<512x384xbf16, #tpu.memory_space<vmem>>, %arg6: memref<1x384xf32, #tpu.memory_space<vmem>>, %arg7: memref<16x384xf32, #tpu.memory_space<vmem>>, %arg8: memref<16x384xf32, #tpu.memory_space<vmem>>) attributes {dimension_semantics = [#tpu.dimension_semantics<parallel>, #tpu.dimension_semantics<arbitrary>], iteration_bounds = array<i64: 1, 3>, scalar_prefetch = 0 : i64, scratch_operands = 1 : i64, tpu.core_type = #tpu.core_type<tc>, window_params = [{transform_indices = @transform_0, window_bounds = array<i64: 16, 384>}, {transform_indices = @transform_1, window_bounds = array<i64: 384, 512>}, {transform_indices = @transform_2, window_bounds = array<i64: 1, 512>}, {transform_indices = @transform_3, window_bounds = array<i64: 512, 384>}, {pipeline_mode = #tpu.pipeline_mode<synchronous>, transform_indices = @transform_4, window_bounds = array<i64: 1, 384>}, {transform_indices = @transform_5, window_bounds = array<i64: 16, 384>}]} {
    %c0_i32 = arith.constant 0 : i32
    %0 = arith.cmpi eq, %arg1, %c0_i32 : i32
    %1 = arith.extui %0 : i1 to i32
    %c0_i32_0 = arith.constant 0 : i32
    %2 = arith.cmpi ne, %1, %c0_i32_0 : i32
    scf.if %2 {
      %cst_15 = arith.constant 0.000000e+00 : f32
      %20 = vector.broadcast %cst_15 : f32 to vector<16x384xf32>
      %c0_16 = arith.constant 0 : index
      %c0_17 = arith.constant 0 : index
      %21 = vector.load %arg8[%c0_16, %c0_17] : memref<16x384xf32, #tpu.memory_space<vmem>>, vector<16x384xf32>
      tpu.vector_store %arg8[%c0_16, %c0_17], %20 {strides = array<i32>} : memref<16x384xf32, #tpu.memory_space<vmem>>, vector<16x384xf32>,
    } else {
    }
    %c0 = arith.constant 0 : index
    %c0_1 = arith.constant 0 : index
    %3 = vector.load %arg2[%c0, %c0_1] : memref<16x384xbf16, #tpu.memory_space<vmem>>, vector<16x384xbf16>
    %c0_2 = arith.constant 0 : index
    %c0_3 = arith.constant 0 : index
    %4 = vector.load %arg3[%c0_2, %c0_3] : memref<384x512xbf16, #tpu.memory_space<vmem>>, vector<384x512xbf16>
    %cst = arith.constant dense<0.000000e+00> : vector<16x512xf32>
    %5 = tpu.matmul %3, %4, %cst {dimension_numbers = #tpu.dot_dimension_numbers<[1], [0], [0], [1], [0, 0, 1, 1], [], []>} : vector<16x384xbf16>, vector<384x512xbf16>, vector<16x512xf32> -> vector<16x512xf32>
    %c0_4 = arith.constant 0 : index
    %c0_5 = arith.constant 0 : index
    %6 = vector.load %arg4[%c0_4, %c0_5] : memref<1x512xf32, #tpu.memory_space<vmem>>, vector<1x512xf32>
    %7 = vector.broadcast %6 : vector<1x512xf32> to vector<16x512xf32>
    %8 = arith.addf %5, %7 : vector<16x512xf32>
    %cst_6 = arith.constant 0.000000e+00 : f32
    %9 = vector.broadcast %cst_6 : f32 to vector<16x512xf32>
    %10 = arith.maximumf %8, %9 : vector<16x512xf32>
    %c0_7 = arith.constant 0 : index
    %c0_8 = arith.constant 0 : index
    %11 = vector.load %arg8[%c0_7, %c0_8] : memref<16x384xf32, #tpu.memory_space<vmem>>, vector<16x384xf32>
    %12 = arith.truncf %10 : vector<16x512xf32> to vector<16x512xbf16>
    %c0_9 = arith.constant 0 : index
    %c0_10 = arith.constant 0 : index
    %13 = vector.load %arg5[%c0_9, %c0_10] : memref<512x384xbf16, #tpu.memory_space<vmem>>, vector<512x384xbf16>
    %cst_11 = arith.constant dense<0.000000e+00> : vector<16x384xf32>
    %14 = tpu.matmul %12, %13, %cst_11 {dimension_numbers = #tpu.dot_dimension_numbers<[1], [0], [0], [1], [0, 0, 1, 1], [], []>} : vector<16x512xbf16>, vector<512x384xbf16>, vector<16x384xf32> -> vector<16x384xf32>
    %15 = arith.addf %11, %14 : vector<16x384xf32>
    %c0_12 = arith.constant 0 : index
    %c0_13 = arith.constant 0 : index
    %16 = vector.load %arg8[%c0_12, %c0_13] : memref<16x384xf32, #tpu.memory_space<vmem>>, vector<16x384xf32>
    tpu.vector_store %arg8[%c0_12, %c0_13], %15 {strides = array<i32>} : memref<16x384xf32, #tpu.memory_space<vmem>>, vector<16x384xf32>,
    %c2_i32 = arith.constant 2 : i32
    %17 = arith.cmpi eq, %arg1, %c2_i32 : i32
    %18 = arith.extui %17 : i1 to i32
    %c0_i32_14 = arith.constant 0 : i32
    %19 = arith.cmpi ne, %18, %c0_i32_14 : i32
    scf.if %19 {
      %c0_15 = arith.constant 0 : index
      %c0_16 = arith.constant 0 : index
      %20 = vector.load %arg8[%c0_15, %c0_16] : memref<16x384xf32, #tpu.memory_space<vmem>>, vector<16x384xf32>
      %c0_17 = arith.constant 0 : index
      %c0_18 = arith.constant 0 : index
      %21 = vector.load %arg6[%c0_17, %c0_18] : memref<1x384xf32, #tpu.memory_space<vmem>>, vector<1x384xf32>
      %22 = vector.broadcast %21 : vector<1x384xf32> to vector<16x384xf32>
      %23 = arith.addf %20, %22 : vector<16x384xf32>
      %c0_19 = arith.constant 0 : index
      %c0_20 = arith.constant 0 : index
      %24 = vector.load %arg7[%c0_19, %c0_20] : memref<16x384xf32, #tpu.memory_space<vmem>>, vector<16x384xf32>
      tpu.vector_store %arg7[%c0_19, %c0_20], %23 {strides = array<i32>} : memref<16x384xf32, #tpu.memory_space<vmem>>, vector<16x384xf32>,
    } else {
    }
    return
  }
  func.func @transform_0(%arg0: i32, %arg1: i32) -> (i32, i32) {
    %c0_i32 = arith.constant 0 : i32
    %c0_i32_0 = arith.constant 0 : i32
    return %arg0, %c0_i32 : i32, i32
  }
  func.func @transform_1(%arg0: i32, %arg1: i32) -> (i32, i32) {
    %c0_i32 = arith.constant 0 : i32
    %c0_i32_0 = arith.constant 0 : i32
    return %c0_i32, %arg1 : i32, i32
  }
  func.func @transform_2(%arg0: i32, %arg1: i32) -> (i32, i32) {
    %c0_i32 = arith.constant 0 : i32
    %c0_i32_0 = arith.constant 0 : i32
    return %c0_i32, %arg1 : i32, i32
  }
  func.func @transform_3(%arg0: i32, %arg1: i32) -> (i32, i32) {
    %c0_i32 = arith.constant 0 : i32
    %c0_i32_0 = arith.constant 0 : i32
    return %arg1, %c0_i32 : i32, i32
  }
  func.func @transform_4(%arg0: i32, %arg1: i32) -> (i32, i32) {
    %c0_i32 = arith.constant 0 : i32
    %c0_i32_0 = arith.constant 0 : i32
    %c0_i32_1 = arith.constant 0 : i32
    return %c0_i32, %c0_i32_0 : i32, i32
  }
  func.func @transform_5(%arg0: i32, %arg1: i32) -> (i32, i32) {
    %c0_i32 = arith.constant 0 : i32
    %c0_i32_0 = arith.constant 0 : i32
    return %arg0, %c0_i32 : i32, i32
  }
}

</mosaic_0001>

<llo_original>
// kernel: tpu_custom_call.1
$region0: #{tpu_custom_call.1}
  #allocation0 [shape = 'u32[]', space=smem, size = 0x4, offset = 0x4, fixed_abs, tag = 'smem constant byte address 0x4 - core index']
  #allocation1 [shape = 'u32[144,128]{1,0:T(1,128)}', space=vmem, size = 0x12000, scoped, tag = 'internal scratch']
  #allocation2 [shape = 'f32[16,384]{1,0:T(8,128)}', space=vmem, size = 0x6000, scoped, tag = 'scratch operand']
  %s0 = inlined_call_operand.hbm [shape: bf16[16,384], index: 0, kind: input, shape index: {}]
  %s1 = inlined_call_operand.hbm [shape: bf16[384,1536], index: 1, kind: input, shape index: {}]
  %s2 = inlined_call_operand.hbm [shape: f32[1,1536], index: 2, kind: input, shape index: {}]
  %s3 = inlined_call_operand.hbm [shape: bf16[1536,384], index: 3, kind: input, shape index: {}]
  %s4 = inlined_call_operand.hbm [shape: f32[1,384], index: 4, kind: input, shape index: {}]
  %s5 = inlined_call_operand.hbm [shape: f32[16,384], index: 5, kind: output, shape index: {}]
  %s6 = sld [smem:[#allocation0]]
  $region81: #{tpu_custom_call.1} parent=0
    _
  %s8 = ssub.s32 1, %s6
  %s9 = scalar_select 0, %s8, %s6
  $region1: #{tpu_custom_call.1} parent=0
    #allocation3 [shape = 'u8[12288]{0}', space=vmem, size = 0x3000, scoped, tag = 'input window, operand 0, single buffered']
    #allocation4 [shape = 's32[2]{0}', space=sflag, size = 0x8, scoped, tag = 'scoped memory for tpu_custom_call.1']
    #allocation5 [shape = 's32[2]{0}', space=sflag, size = 0x8, scoped, tag = 'scoped memory for tpu_custom_call.1']
    #allocation6 [shape = 'u8[786432]{0}', space=vmem, size = 0xc0000, scoped, tag = 'input window, operand 1']
    #allocation7 [shape = 's32[2]{0}', space=sflag, size = 0x8, scoped, tag = 'scoped memory for tpu_custom_call.1']
    #allocation8 [shape = 'u8[4096]{0}', space=vmem, size = 0x1000, scoped, tag = 'input window, operand 2']
    #allocation9 [shape = 'u8[786432]{0}', space=vmem, size = 0xc0000, scoped, tag = 'input window, operand 3']
    #allocation10 [shape = 's32[2]{0}', space=sflag, size = 0x8, scoped, tag = 'scoped memory for tpu_custom_call.1']
    #allocation11 [shape = 'u8[1536]{0}', space=vmem, size = 0x800, scoped, tag = 'input window, operand 4, single buffered']
    #allocation12 [shape = 'u8[24576]{0}', space=vmem, size = 0x6000, scoped, tag = 'output window, operand 0, single buffered']
    %10 = vsyncpa [#allocation4], 0
    %11 = vsyncpa [#allocation7], 0
    %s12 = scalar_lea.sflag [#allocation7], 1
    %13 = vsyncpa %s12, 0
    %14 = vsyncpa [#allocation10], 0
    %s15 = scalar_lea.sflag [#allocation10], 1
    %16 = vsyncpa %s15, 0
    %17 = vsyncpa [#allocation5], 0
    loop: start=0, step=1, limit=5
    $region2: #{tpu_custom_call.1} parent=1 // loop_pre_header
      _
    $region3: #{tpu_custom_call.1} parent=1 // loop_header
      %s19 = sphi 0, %s23
      %p20 = scmp.ge.s32.totalorder %s19, 5
      %s26 = sphi 0, %s38
      %s27 = sphi 0, %s34
      %s28 = sphi 0, %s26
      %s29 = sphi 0, %s27
      %s30 = sphi 0, %s28
      %s31 = sphi 0, %s29
      %s41 = sphi 0, %s43
      %s44 = sphi 0, %s41
      %s45 = sphi 0, %s44
      %s61 = sphi 0, %s45
      %s67 = sphi 0, %s69
      %s70 = sphi 0, %s67
      %s71 = sphi 0, %s70
      %s87 = sphi 0, %s71
      %s93 = sphi 0, %s95
      %s96 = sphi 0, %s93
      %s97 = sphi 0, %s96
      %s113 = sphi 0, %s97
      %s119 = sphi 0, %s121
      %s122 = sphi 0, %s119
      %s123 = sphi 0, %s122
      %s139 = sphi 0, %s123
      %s143 = sphi 0, %s143
      %s145 = sphi 0, %s143
      %s146 = sphi 0, %s145
      %s160 = sphi 0, %s146
      %s166 = sphi 0, %s168
      %s169 = sphi 0, %s166
      %s170 = sphi 0, %s169
      %s186 = sphi 0, %s170
    $region4: #{tpu_custom_call.1} parent=1 // loop_header_branch
      %22 = sbr.rel (%p20) target = $region8
    $region5: #{tpu_custom_call.1} parent=1 // loop_body
      %s24 = ssub.s32 %s19, 1
      %s25 = ssub.s32 %s19, 2
      %s32 = sadd.s32 1, %s27
      %p33 = scmp.ge.s32.totalorder %s32, 3
      %s34 = scalar_select %p33, 0, %s32
      %s35 = sadd.s32 1, %s26
      %s36 = scalar_select %p33, %s35, %s26
      %p37 = scmp.ge.s32.totalorder %s36, 1
      %s38 = scalar_select %p37, 0, %s36
      %s39 = ssub.s32 %s26, %s38
      %p40 = scmp.eq.s32.totalorder %s39, 0
      %s42 = sadd.s32 %s41, 1
      %s43 = scalar_select %p40, %s41, %s42
      %p46 = pneg %p40
      %p47 = scmp.eq.s32.totalorder %s19, 2
      %p48 = por %p46, %p47
      %p49 = scmp.ne.s32.totalorder %s41, %s44
      %p50 = scmp.eq.s32.totalorder %s19, 0
      %p51 = por %p49, %p50
      %p52 = scmp.ne.s32.totalorder %s41, %s44
      %p53 = scmp.eq.s32.totalorder %s24, 2
      %p54 = por %p52, %p53
      %p55 = scmp.ne.s32.totalorder %s44, %s45
      %p56 = scmp.eq.s32.totalorder %s24, 0
      %p57 = por %p55, %p56
      %p58 = scmp.ne.s32.totalorder %s44, %s45
      %p59 = scmp.eq.s32.totalorder %s25, 2
      %p60 = por %p58, %p59
      %p62 = scmp.ne.s32.totalorder %s45, %s61
      %p63 = scmp.eq.s32.totalorder %s25, 0
      %p64 = por %p62, %p63
      %s65 = ssub.s32 %s27, %s34
      %p66 = scmp.eq.s32.totalorder %s65, 0
      %s68 = sadd.s32 %s67, 1
      %s69 = scalar_select %p66, %s67, %s68
      %p72 = pneg %p66
      %p73 = scmp.eq.s32.totalorder %s19, 2
      %p74 = por %p72, %p73
      %p75 = scmp.ne.s32.totalorder %s67, %s70
      %p76 = scmp.eq.s32.totalorder %s19, 0
      %p77 = por %p75, %p76
      %p78 = scmp.ne.s32.totalorder %s67, %s70
      %p79 = scmp.eq.s32.totalorder %s24, 2
      %p80 = por %p78, %p79
      %p81 = scmp.ne.s32.totalorder %s70, %s71
      %p82 = scmp.eq.s32.totalorder %s24, 0
      %p83 = por %p81, %p82
      %p84 = scmp.ne.s32.totalorder %s70, %s71
      %p85 = scmp.eq.s32.totalorder %s25, 2
      %p86 = por %p84, %p85
      %p88 = scmp.ne.s32.totalorder %s71, %s87
      %p89 = scmp.eq.s32.totalorder %s25, 0
      %p90 = por %p88, %p89
      %s91 = ssub.s32 %s27, %s34
      %p92 = scmp.eq.s32.totalorder %s91, 0
      %s94 = sadd.s32 %s93, 1
      %s95 = scalar_select %p92, %s93, %s94
      %p98 = pneg %p92
      %p99 = scmp.eq.s32.totalorder %s19, 2
      %p100 = por %p98, %p99
      %p101 = scmp.ne.s32.totalorder %s93, %s96
      %p102 = scmp.eq.s32.totalorder %s19, 0
      %p103 = por %p101, %p102
      %p104 = scmp.ne.s32.totalorder %s93, %s96
      %p105 = scmp.eq.s32.totalorder %s24, 2
      %p106 = por %p104, %p105
      %p107 = scmp.ne.s32.totalorder %s96, %s97
      %p108 = scmp.eq.s32.totalorder %s24, 0
      %p109 = por %p107, %p108
      %p110 = scmp.ne.s32.totalorder %s96, %s97
      %p111 = scmp.eq.s32.totalorder %s25, 2
      %p112 = por %p110, %p111
      %p114 = scmp.ne.s32.totalorder %s97, %s113
      %p115 = scmp.eq.s32.totalorder %s25, 0
      %p116 = por %p114, %p115
      %s117 = ssub.s32 %s27, %s34
      %p118 = scmp.eq.s32.totalorder %s117, 0
      %s120 = sadd.s32 %s119, 1
      %s121 = scalar_select %p118, %s119, %s120
      %p124 = pneg %p118
      %p125 = scmp.eq.s32.totalorder %s19, 2
      %p126 = por %p124, %p125
      %p127 = scmp.ne.s32.totalorder %s119, %s122
      %p128 = scmp.eq.s32.totalorder %s19, 0
      %p129 = por %p127, %p128
      %p130 = scmp.ne.s32.totalorder %s119, %s122
      %p131 = scmp.eq.s32.totalorder %s24, 2
      %p132 = por %p130, %p131
      %p133 = scmp.ne.s32.totalorder %s122, %s123
      %p134 = scmp.eq.s32.totalorder %s24, 0
      %p135 = por %p133, %p134
      %p136 = scmp.ne.s32.totalorder %s122, %s123
      %p137 = scmp.eq.s32.totalorder %s25, 2
      %p138 = por %p136, %p137
      %p140 = scmp.ne.s32.totalorder %s123, %s139
      %p141 = scmp.eq.s32.totalorder %s25, 0
      %p142 = por %p140, %p141
      %s144 = sadd.s32 %s143, 1
      %p147 = scmp.eq.s32.totalorder %s19, 2
      %p148 = scmp.ne.s32.totalorder %s143, %s145
      %p149 = scmp.eq.s32.totalorder %s19, 0
      %p150 = por %p148, %p149
      %p151 = scmp.ne.s32.totalorder %s143, %s145
      %p152 = scmp.eq.s32.totalorder %s24, 2
      %p153 = por %p151, %p152
      %p154 = scmp.ne.s32.totalorder %s145, %s146
      %p155 = scmp.eq.s32.totalorder %s24, 0
      %p156 = por %p154, %p155
      %p157 = scmp.ne.s32.totalorder %s145, %s146
      %p158 = scmp.eq.s32.totalorder %s25, 2
      %p159 = por %p157, %p158
      %p161 = scmp.ne.s32.totalorder %s146, %s160
      %p162 = scmp.eq.s32.totalorder %s25, 0
      %p163 = por %p161, %p162
      %s164 = ssub.s32 %s26, %s38
      %p165 = scmp.eq.s32.totalorder %s164, 0
      %s167 = sadd.s32 %s166, 1
      %s168 = scalar_select %p165, %s166, %s167
      %p171 = pneg %p165
      %p172 = scmp.eq.s32.totalorder %s19, 2
      %p173 = por %p171, %p172
      %p174 = scmp.ne.s32.totalorder %s166, %s169
      %p175 = scmp.eq.s32.totalorder %s19, 0
      %p176 = por %p174, %p175
      %p177 = scmp.ne.s32.totalorder %s166, %s169
      %p178 = scmp.eq.s32.totalorder %s24, 2
      %p179 = por %p177, %p178
      %p180 = scmp.ne.s32.totalorder %s169, %s170
      %p181 = scmp.eq.s32.totalorder %s24, 0
      %p182 = por %p180, %p181
      %p183 = scmp.ne.s32.totalorder %s169, %s170
      %p184 = scmp.eq.s32.totalorder %s25, 2
      %p185 = por %p183, %p184
      %p187 = scmp.ne.s32.totalorder %s170, %s186
      %p188 = scmp.eq.s32.totalorder %s25, 0
      %p189 = por %p187, %p188
      %p190 = scmp.le.s32.totalorder 1, %s19
      %p191 = scmp.lt.s32.totalorder %s19, 4
      %p192 = pnand %p190, %p191
      %p193 = pneg %p192
      // Predicated region
      $region9: #{tpu_custom_call.1} parent=5 // pred_check
        _
      $region10: #{tpu_custom_call.1} parent=5 // pred_check_branch
        %195 = sbr.rel (%p192) target = $region12
      $region11: #{tpu_custom_call.1} parent=5 // pred_region
        %s196 = ssub.s32 %s19, 1
        // Predicated region
        $region13: #{tpu_custom_call.1} parent=11 // pred_check
          %p197 = pneg %p57
        $region14: #{tpu_custom_call.1} parent=11 // pred_check_branch
          %199 = sbr.rel (%p197) target = $region16
        $region15: #{tpu_custom_call.1} parent=11 // pred_region
          %s200 = smul.u32 2, %s28
          %s202 = ssub.s32 384, 384
          %203 = vsyncadd [#allocation4], %s202
          %s204 = smul.addr %s200, 3
          %s205 = smul.addr %s204, 64
          %s206 = scalar_lea.hbm %s0, %s205
          %s207 = sshll.u32 [#allocation3], 4
          %s208 = int_to_ptr.vmem [resolvable:$true] %s207
          %213 = dma.hbm_to_vmem [thread:$0]  %s206, 384, %s208, [#allocation4], 192, 192, 12
        $region16: #{tpu_custom_call.1} parent=11 // pred_fallthru
          _
        // Predicated region
        $region17: #{tpu_custom_call.1} parent=11 // pred_check
          %p214 = pneg %p156
        $region18: #{tpu_custom_call.1} parent=11 // pred_check_branch
          %216 = sbr.rel (%p214) target = $region20
        $region19: #{tpu_custom_call.1} parent=11 // pred_region
          %s218 = ssub.s32 48, 48
          %219 = vsyncadd [#allocation10], %s218
          %s221 = sshll.u32 [#allocation11], 4
          %s222 = int_to_ptr.vmem [resolvable:$true] %s221
          %224 = dma.hbm_to_vmem [thread:$0]  %s4, 48, %s222, [#allocation10]
        $region20: #{tpu_custom_call.1} parent=11 // pred_fallthru
          _
      $region12: #{tpu_custom_call.1} parent=5 // pred_fallthru
        _
      %p225 = scmp.lt.s32.totalorder %s19, 3
      // Predicated region
      $region21: #{tpu_custom_call.1} parent=5 // pred_check
        %p226 = pneg %p225
      $region22: #{tpu_custom_call.1} parent=5 // pred_check_branch
        %228 = sbr.rel (%p226) target = $region24
      $region23: #{tpu_custom_call.1} parent=5 // pred_region
        // Predicated region
        $region25: #{tpu_custom_call.1} parent=23 // pred_check
          %p229 = pneg %p77
        $region26: #{tpu_custom_call.1} parent=23 // pred_check_branch
          %231 = sbr.rel (%p229) target = $region28
        $region27: #{tpu_custom_call.1} parent=23 // pred_region
          %s232 = sand.u32 %s19, 1
          %s233 = scalar_lea.sflag [#allocation7], %s232
          %s234 = sand.u32 %s67, 1
          %s235 = smul.addr %s234, 768
          %s236 = scalar_lea.vmem [#allocation6], %s235
          %s237 = smul.u32 4, %s27
          %s239 = ssub.s32 12288, 12288
          %240 = vsyncadd %s233, %s239
          %s241 = smul.addr %s237, 64
          %s242 = scalar_lea.hbm %s1, %s241
          %s243 = sshll.u32 %s236, 4
          %s244 = int_to_ptr.vmem [resolvable:$true] %s243
          %249 = dma.hbm_to_vmem [thread:$0]  %s242, 12288, %s244, %s233, 768, 256, 16
        $region28: #{tpu_custom_call.1} parent=23 // pred_fallthru
          _
        // Predicated region
        $region29: #{tpu_custom_call.1} parent=23 // pred_check
          %p250 = pneg %p103
        $region30: #{tpu_custom_call.1} parent=23 // pred_check_branch
          %252 = sbr.rel (%p250) target = $region32
        $region31: #{tpu_custom_call.1} parent=23 // pred_region
          %s253 = sand.u32 %s19, 1
          %s254 = scalar_lea.sflag [#allocation7], %s253
          %s255 = sand.u32 %s93, 1
          %s256 = smul.addr %s255, 4
          %s257 = scalar_lea.vmem [#allocation8], %s256
          %s258 = smul.u32 4, %s27
          %s260 = ssub.s32 64, 64
          %261 = vsyncadd %s254, %s260
          %s262 = smul.addr %s258, 16
          %s263 = scalar_lea.hbm %s2, %s262
          %s265 = sshll.u32 %s257, 4
          %s266 = int_to_ptr.vmem [resolvable:$true] %s265
          %268 = dma.hbm_to_vmem [thread:$0]  %s263, 64, %s266, %s254
        $region32: #{tpu_custom_call.1} parent=23 // pred_fallthru
          _
        // Predicated region
        $region33: #{tpu_custom_call.1} parent=23 // pred_check
          %p269 = pneg %p129
        $region34: #{tpu_custom_call.1} parent=23 // pred_check_branch
          %271 = sbr.rel (%p269) target = $region36
        $region35: #{tpu_custom_call.1} parent=23 // pred_region
          %s272 = sand.u32 %s19, 1
          %s273 = scalar_lea.sflag [#allocation10], %s272
          %s274 = sand.u32 %s119, 1
          %s275 = smul.addr %s274, 768
          %s276 = scalar_lea.vmem [#allocation9], %s275
          %s277 = smul.u32 64, %s27
          %s279 = ssub.s32 12288, 12288
          %280 = vsyncadd %s273, %s279
          %s281 = smul.addr %s277, 3
          %s282 = smul.addr %s281, 64
          %s283 = scalar_lea.hbm %s3, %s282
          %s284 = sshll.u32 %s276, 4
          %s285 = int_to_ptr.vmem [resolvable:$true] %s284
          %290 = dma.hbm_to_vmem [thread:$0]  %s283, 12288, %s285, %s273, 192, 192, 12
        $region36: #{tpu_custom_call.1} parent=23 // pred_fallthru
          _
      $region24: #{tpu_custom_call.1} parent=5 // pred_fallthru
        _
      %p291 = scmp.le.s32.totalorder 1, %s19
      %p292 = scmp.lt.s32.totalorder %s19, 4
      %p293 = pnand %p291, %p292
      %p294 = pneg %p293
      // Predicated region
      $region37: #{tpu_custom_call.1} parent=5 // pred_check
        _
      $region38: #{tpu_custom_call.1} parent=5 // pred_check_branch
        %296 = sbr.rel (%p293) target = $region40
      $region39: #{tpu_custom_call.1} parent=5 // pred_region
        %s297 = ssub.s32 %s19, 1
        // Predicated region
        $region41: #{tpu_custom_call.1} parent=39 // pred_check
          %p298 = pneg %p57
        $region42: #{tpu_custom_call.1} parent=39 // pred_check_branch
          %300 = sbr.rel (%p298) target = $region44
        $region43: #{tpu_custom_call.1} parent=39 // pred_region
          %301 = dma.done [#allocation4], 384
        $region44: #{tpu_custom_call.1} parent=39 // pred_fallthru
          _
        %s302 = sand.u32 %s24, 1
        %s303 = scalar_lea.sflag [#allocation7], %s302
        %s304 = sand.u32 %s70, 1
        %s305 = smul.addr %s304, 768
        %s306 = scalar_lea.vmem [#allocation6], %s305
        // Predicated region
        $region45: #{tpu_custom_call.1} parent=39 // pred_check
          %p307 = pneg %p83
        $region46: #{tpu_custom_call.1} parent=39 // pred_check_branch
          %309 = sbr.rel (%p307) target = $region48
        $region47: #{tpu_custom_call.1} parent=39 // pred_region
          %310 = dma.done %s303, 12288
        $region48: #{tpu_custom_call.1} parent=39 // pred_fallthru
          _
        %s311 = sand.u32 %s24, 1
        %s312 = scalar_lea.sflag [#allocation7], %s311
        %s313 = sand.u32 %s96, 1
        %s314 = smul.addr %s313, 4
        %s315 = scalar_lea.vmem [#allocation8], %s314
        // Predicated region
        $region49: #{tpu_custom_call.1} parent=39 // pred_check
          %p316 = pneg %p109
        $region50: #{tpu_custom_call.1} parent=39 // pred_check_branch
          %318 = sbr.rel (%p316) target = $region52
        $region51: #{tpu_custom_call.1} parent=39 // pred_region
          %319 = dma.done %s312, 64
        $region52: #{tpu_custom_call.1} parent=39 // pred_fallthru
          _
        %s320 = sand.u32 %s24, 1
        %s321 = scalar_lea.sflag [#allocation10], %s320
        %s322 = sand.u32 %s122, 1
        %s323 = smul.addr %s322, 768
        %s324 = scalar_lea.vmem [#allocation9], %s323
        // Predicated region
        $region53: #{tpu_custom_call.1} parent=39 // pred_check
          %p325 = pneg %p135
        $region54: #{tpu_custom_call.1} parent=39 // pred_check_branch
          %327 = sbr.rel (%p325) target = $region56
        $region55: #{tpu_custom_call.1} parent=39 // pred_region
          %328 = dma.done %s321, 12288
        $region56: #{tpu_custom_call.1} parent=39 // pred_fallthru
          _
        // Predicated region
        $region57: #{tpu_custom_call.1} parent=39 // pred_check
          %p329 = pneg %p156
        $region58: #{tpu_custom_call.1} parent=39 // pred_check_branch
          %331 = sbr.rel (%p329) target = $region60
        $region59: #{tpu_custom_call.1} parent=39 // pred_region
          %332 = dma.done [#allocation10], 48
        $region60: #{tpu_custom_call.1} parent=39 // pred_fallthru
          _
        %p333 = pneg %p57
        %p334 = pneg %p54
        %s335 = sand.u32 %s24, 1
        %s336 = scalar_lea.sflag [#allocation7], %s335
        %s337 = sand.u32 %s70, 1
        %s338 = smul.addr %s337, 768
        %s339 = scalar_lea.vmem [#allocation6], %s338
        %p340 = pneg %p83
        %p341 = pneg %p80
        %s342 = sand.u32 %s24, 1
        %s343 = scalar_lea.sflag [#allocation7], %s342
        %s344 = sand.u32 %s96, 1
        %s345 = smul.addr %s344, 4
        %s346 = scalar_lea.vmem [#allocation8], %s345
        %p347 = pneg %p109
        %p348 = pneg %p106
        %s349 = sand.u32 %s24, 1
        %s350 = scalar_lea.sflag [#allocation10], %s349
        %s351 = sand.u32 %s122, 1
        %s352 = smul.addr %s351, 768
        %s353 = scalar_lea.vmem [#allocation9], %s352
        %p354 = pneg %p135
        %p355 = pneg %p132
        %p356 = pneg %p156
        %p357 = pneg %p153
        %p358 = pneg %p182
        %p359 = pneg %p179
        %s360 = smul.u32 2, %s28
        %s361 = smul.u32 4, %s29
        %s362 = smul.u32 4, %s29
        %s363 = smul.u32 64, %s29
        %s364 = smul.u32 2, %s28
        %p366 = scmp.eq.s32.totalorder %s29, 0
        // Predicated region
        $region61: #{tpu_custom_call.1} parent=39 // pred_check
          %p367 = pneg %p366
        $region62: #{tpu_custom_call.1} parent=39 // pred_check_branch
          %369 = sbr.rel (%p367) target = $region64
        $region63: #{tpu_custom_call.1} parent=39 // pred_region
          %370 = vst [vmem:[#allocation2] sm:$0xff] 0.0
          %371 = vst [vmem:[#allocation2 + $0x8] sm:$0xff] 0.0
          %372 = vst [vmem:[#allocation2 + $0x10] sm:$0xff] 0.0
          %373 = vst [vmem:[#allocation2 + $0x18] sm:$0xff] 0.0
          %374 = vst [vmem:[#allocation2 + $0x20] sm:$0xff] 0.0
          %375 = vst [vmem:[#allocation2 + $0x28] sm:$0xff] 0.0
        $region64: #{tpu_custom_call.1} parent=39 // pred_fallthru
          _
        %v376 = vld [vmem:[#allocation3] sm:$0xff]
        %v377 = vld [vmem:[#allocation3 + $0x8] sm:$0xf]
        %v378 = vld [vmem:[#allocation3 + $0xc] sm:$0xff]
        %v379 = vld [vmem:[#allocation3 + $0x14] sm:$0xf]
        %v380 = vld [vmem:[%s306] sm:$0xff]
        %v381 = vld [vmem:[%s306 + $0x8] sm:$0xff]
        %v382 = vld [vmem:[%s306 + $0x10] sm:$0xff]
        %v383 = vld [vmem:[%s306 + $0x18] sm:$0xff]
        %v384 = vld [vmem:[%s306 + $0x20] sm:$0xff]
        %v385 = vld [vmem:[%s306 + $0x28] sm:$0xff]
        %v386 = vld [vmem:[%s306 + $0x30] sm:$0xff]
        %v387 = vld [vmem:[%s306 + $0x38] sm:$0xff]
        %v388 = vld [vmem:[%s306 + $0x40] sm:$0xff]
        %v389 = vld [vmem:[%s306 + $0x48] sm:$0xff]
        %v390 = vld [vmem:[%s306 + $0x50] sm:$0xff]
        %v391 = vld [vmem:[%s306 + $0x58] sm:$0xff]
        %v392 = vld [vmem:[%s306 + $0x60] sm:$0xff]
        %v393 = vld [vmem:[%s306 + $0x68] sm:$0xff]
        %v394 = vld [vmem:[%s306 + $0x70] sm:$0xff]
        %v395 = vld [vmem:[%s306 + $0x78] sm:$0xff]
        %v396 = vld [vmem:[%s306 + $0x80] sm:$0xff]
        %v397 = vld [vmem:[%s306 + $0x88] sm:$0xff]
        %v398 = vld [vmem:[%s306 + $0x90] sm:$0xff]
        %v399 = vld [vmem:[%s306 + $0x98] sm:$0xff]
        %v400 = vld [vmem:[%s306 + $0xa0] sm:$0xff]
        %v401 = vld [vmem:[%s306 + $0xa8] sm:$0xff]
        %v402 = vld [vmem:[%s306 + $0xb0] sm:$0xff]
        %v403 = vld [vmem:[%s306 + $0xb8] sm:$0xff]
        %v404 = vld [vmem:[%s306 + $0xc0] sm:$0xff]
        %v405 = vld [vmem:[%s306 + $0xc8] sm:$0xff]
        %v406 = vld [vmem:[%s306 + $0xd0] sm:$0xff]
        %v407 = vld [vmem:[%s306 + $0xd8] sm:$0xff]
        %v408 = vld [vmem:[%s306 + $0xe0] sm:$0xff]
        %v409 = vld [vmem:[%s306 + $0xe8] sm:$0xff]
        %v410 = vld [vmem:[%s306 + $0xf0] sm:$0xff]
        %v411 = vld [vmem:[%s306 + $0xf8] sm:$0xff]
        %v412 = vld [vmem:[%s306 + $0x100] sm:$0xff]
        %v413 = vld [vmem:[%s306 + $0x108] sm:$0xff]
        %v414 = vld [vmem:[%s306 + $0x110] sm:$0xff]
        %v415 = vld [vmem:[%s306 + $0x118] sm:$0xff]
        %v416 = vld [vmem:[%s306 + $0x120] sm:$0xff]
        %v417 = vld [vmem:[%s306 + $0x128] sm:$0xff]
        %v418 = vld [vmem:[%s306 + $0x130] sm:$0xff]
        %v419 = vld [vmem:[%s306 + $0x138] sm:$0xff]
        %v420 = vld [vmem:[%s306 + $0x140] sm:$0xff]
        %v421 = vld [vmem:[%s306 + $0x148] sm:$0xff]
        %v422 = vld [vmem:[%s306 + $0x150] sm:$0xff]
        %v423 = vld [vmem:[%s306 + $0x158] sm:$0xff]
        %v424 = vld [vmem:[%s306 + $0x160] sm:$0xff]
        %v425 = vld [vmem:[%s306 + $0x168] sm:$0xff]
        %v426 = vld [vmem:[%s306 + $0x170] sm:$0xff]
        %v427 = vld [vmem:[%s306 + $0x178] sm:$0xff]
        %v428 = vld [vmem:[%s306 + $0x180] sm:$0xff]
        %v429 = vld [vmem:[%s306 + $0x188] sm:$0xff]
        %v430 = vld [vmem:[%s306 + $0x190] sm:$0xff]
        %v431 = vld [vmem:[%s306 + $0x198] sm:$0xff]
        %v432 = vld [vmem:[%s306 + $0x1a0] sm:$0xff]
        %v433 = vld [vmem:[%s306 + $0x1a8] sm:$0xff]
        %v434 = vld [vmem:[%s306 + $0x1b0] sm:$0xff]
        %v435 = vld [vmem:[%s306 + $0x1b8] sm:$0xff]
        %v436 = vld [vmem:[%s306 + $0x1c0] sm:$0xff]
        %v437 = vld [vmem:[%s306 + $0x1c8] sm:$0xff]
        %v438 = vld [vmem:[%s306 + $0x1d0] sm:$0xff]
        %v439 = vld [vmem:[%s306 + $0x1d8] sm:$0xff]
        %v440 = vld [vmem:[%s306 + $0x1e0] sm:$0xff]
        %v441 = vld [vmem:[%s306 + $0x1e8] sm:$0xff]
        %v442 = vld [vmem:[%s306 + $0x1f0] sm:$0xff]
        %v443 = vld [vmem:[%s306 + $0x1f8] sm:$0xff]
        %v444 = vld [vmem:[%s306 + $0x200] sm:$0xff]
        %v445 = vld [vmem:[%s306 + $0x208] sm:$0xff]
        %v446 = vld [vmem:[%s306 + $0x210] sm:$0xff]
        %v447 = vld [vmem:[%s306 + $0x218] sm:$0xff]
        %v448 = vld [vmem:[%s306 + $0x220] sm:$0xff]
        %v449 = vld [vmem:[%s306 + $0x228] sm:$0xff]
        %v450 = vld [vmem:[%s306 + $0x230] sm:$0xff]
        %v451 = vld [vmem:[%s306 + $0x238] sm:$0xff]
        %v452 = vld [vmem:[%s306 + $0x240] sm:$0xff]
        %v453 = vld [vmem:[%s306 + $0x248] sm:$0xff]
        %v454 = vld [vmem:[%s306 + $0x250] sm:$0xff]
        %v455 = vld [vmem:[%s306 + $0x258] sm:$0xff]
        %v456 = vld [vmem:[%s306 + $0x260] sm:$0xff]
        %v457 = vld [vmem:[%s306 + $0x268] sm:$0xff]
        %v458 = vld [vmem:[%s306 + $0x270] sm:$0xff]
        %v459 = vld [vmem:[%s306 + $0x278] sm:$0xff]
        %v460 = vld [vmem:[%s306 + $0x280] sm:$0xff]
        %v461 = vld [vmem:[%s306 + $0x288] sm:$0xff]
        %v462 = vld [vmem:[%s306 + $0x290] sm:$0xff]
        %v463 = vld [vmem:[%s306 + $0x298] sm:$0xff]
        %v464 = vld [vmem:[%s306 + $0x2a0] sm:$0xff]
        %v465 = vld [vmem:[%s306 + $0x2a8] sm:$0xff]
        %v466 = vld [vmem:[%s306 + $0x2b0] sm:$0xff]
        %v467 = vld [vmem:[%s306 + $0x2b8] sm:$0xff]
        %v468 = vld [vmem:[%s306 + $0x2c0] sm:$0xff]
        %v469 = vld [vmem:[%s306 + $0x2c8] sm:$0xff]
        %v470 = vld [vmem:[%s306 + $0x2d0] sm:$0xff]
        %v471 = vld [vmem:[%s306 + $0x2d8] sm:$0xff]
        %v472 = vld [vmem:[%s306 + $0x2e0] sm:$0xff]
        %v473 = vld [vmem:[%s306 + $0x2e8] sm:$0xff]
        %v474 = vld [vmem:[%s306 + $0x2f0] sm:$0xff]
        %v475 = vld [vmem:[%s306 + $0x2f8] sm:$0xff]
        %v476 = vld [vmem:[%s315] sm:$0xf]
        %v478 = vlaneseq
        %v479 = vshrl.u32 %v478, 7
        %v480 = vsub.s32 0, %v479
        %v481 = vrot.slane %v476, %v480
        %v482 = vlaneseq
        %v483 = vshrl.u32 %v482, 7
        %v484 = vsub.s32 1, %v483
        %v485 = vrot.slane %v476, %v484
        %v486 = vlaneseq
        %v487 = vshrl.u32 %v486, 7
        %v488 = vsub.s32 2, %v487
        %v489 = vrot.slane %v476, %v488
        %v490 = vlaneseq
        %v491 = vshrl.u32 %v490, 7
        %v492 = vsub.s32 3, %v491
        %v493 = vrot.slane %v476, %v492
        %v502 = vunpack.c.l.b16 %v376
        %v503 = vunpack.c.h.b16 %v376
        %v504 = vunpack.c.l.b16 %v377
        %v505 = vunpack.c.l.b16 %v378
        %v506 = vunpack.c.h.b16 %v378
        %v507 = vunpack.c.l.b16 %v379
        %v508 = vpack.c.b16 %v505, %v502
        %v509 = vpack.c.b16 %v506, %v503
        %v510 = vpack.c.b16 %v507, %v504
        %v610 = vunpack.c.l.b16 %v380
        %v611 = vunpack.c.h.b16 %v380
        %v612 = vunpack.c.l.b16 %v381
        %v613 = vunpack.c.h.b16 %v381
        %v614 = vunpack.c.l.b16 %v382
        %v615 = vunpack.c.h.b16 %v382
        %v616 = vunpack.c.l.b16 %v383
        %v617 = vunpack.c.h.b16 %v383
        %v618 = vunpack.c.l.b16 %v384
        %v619 = vunpack.c.h.b16 %v384
        %v620 = vunpack.c.l.b16 %v385
        %v621 = vunpack.c.h.b16 %v385
        %v622 = vunpack.c.l.b16 %v386
        %v623 = vunpack.c.h.b16 %v386
        %v624 = vunpack.c.l.b16 %v387
        %v625 = vunpack.c.h.b16 %v387
        %v626 = vunpack.c.l.b16 %v388
        %v627 = vunpack.c.h.b16 %v388
        %v628 = vunpack.c.l.b16 %v389
        %v629 = vunpack.c.h.b16 %v389
        %v630 = vunpack.c.l.b16 %v390
        %v631 = vunpack.c.h.b16 %v390
        %v632 = vunpack.c.l.b16 %v391
        %v633 = vunpack.c.h.b16 %v391
        %v634 = vunpack.c.l.b16 %v392
        %v635 = vunpack.c.h.b16 %v392
        %v636 = vunpack.c.l.b16 %v393
        %v637 = vunpack.c.h.b16 %v393
        %v638 = vunpack.c.l.b16 %v394
        %v639 = vunpack.c.h.b16 %v394
        %v640 = vunpack.c.l.b16 %v395
        %v641 = vunpack.c.h.b16 %v395
        %v642 = vunpack.c.l.b16 %v396
        %v643 = vunpack.c.h.b16 %v396
        %v644 = vunpack.c.l.b16 %v397
        %v645 = vunpack.c.h.b16 %v397
        %v646 = vunpack.c.l.b16 %v398
        %v647 = vunpack.c.h.b16 %v398
        %v648 = vunpack.c.l.b16 %v399
        %v649 = vunpack.c.h.b16 %v399
        %v650 = vunpack.c.l.b16 %v400
        %v651 = vunpack.c.h.b16 %v400
        %v652 = vunpack.c.l.b16 %v401
        %v653 = vunpack.c.h.b16 %v401
        %v654 = vunpack.c.l.b16 %v402
        %v655 = vunpack.c.h.b16 %v402
        %v656 = vunpack.c.l.b16 %v403
        %v657 = vunpack.c.h.b16 %v403
        %v658 = vunpack.c.l.b16 %v404
        %v659 = vunpack.c.h.b16 %v404
        %v660 = vunpack.c.l.b16 %v405
        %v661 = vunpack.c.h.b16 %v405
        %v662 = vunpack.c.l.b16 %v406
        %v663 = vunpack.c.h.b16 %v406
        %v664 = vunpack.c.l.b16 %v407
        %v665 = vunpack.c.h.b16 %v407
        %v666 = vunpack.c.l.b16 %v408
        %v667 = vunpack.c.h.b16 %v408
        %v668 = vunpack.c.l.b16 %v409
        %v669 = vunpack.c.h.b16 %v409
        %v670 = vunpack.c.l.b16 %v410
        %v671 = vunpack.c.h.b16 %v410
        %v672 = vunpack.c.l.b16 %v411
        %v673 = vunpack.c.h.b16 %v411
        %v674 = vunpack.c.l.b16 %v412
        %v675 = vunpack.c.h.b16 %v412
        %v676 = vunpack.c.l.b16 %v413
        %v677 = vunpack.c.h.b16 %v413
        %v678 = vunpack.c.l.b16 %v414
        %v679 = vunpack.c.h.b16 %v414
        %v680 = vunpack.c.l.b16 %v415
        %v681 = vunpack.c.h.b16 %v415
        %v682 = vunpack.c.l.b16 %v416
        %v683 = vunpack.c.h.b16 %v416
        %v684 = vunpack.c.l.b16 %v417
        %v685 = vunpack.c.h.b16 %v417
        %v686 = vunpack.c.l.b16 %v418
        %v687 = vunpack.c.h.b16 %v418
        %v688 = vunpack.c.l.b16 %v419
        %v689 = vunpack.c.h.b16 %v419
        %v690 = vunpack.c.l.b16 %v420
        %v691 = vunpack.c.h.b16 %v420
        %v692 = vunpack.c.l.b16 %v421
        %v693 = vunpack.c.h.b16 %v421
        %v694 = vunpack.c.l.b16 %v422
        %v695 = vunpack.c.h.b16 %v422
        %v696 = vunpack.c.l.b16 %v423
        %v697 = vunpack.c.h.b16 %v423
        %v698 = vunpack.c.l.b16 %v424
        %v699 = vunpack.c.h.b16 %v424
        %v700 = vunpack.c.l.b16 %v425
        %v701 = vunpack.c.h.b16 %v425
        %v702 = vunpack.c.l.b16 %v426
        %v703 = vunpack.c.h.b16 %v426
        %v704 = vunpack.c.l.b16 %v427
        %v705 = vunpack.c.h.b16 %v427
        %v706 = vunpack.c.l.b16 %v428
        %v707 = vunpack.c.h.b16 %v428
        %v708 = vunpack.c.l.b16 %v429
        %v709 = vunpack.c.h.b16 %v429
        %v710 = vunpack.c.l.b16 %v430
        %v711 = vunpack.c.h.b16 %v430
        %v712 = vunpack.c.l.b16 %v431
        %v713 = vunpack.c.h.b16 %v431
        %v714 = vunpack.c.l.b16 %v432
        %v715 = vunpack.c.h.b16 %v432
        %v716 = vunpack.c.l.b16 %v433
        %v717 = vunpack.c.h.b16 %v433
        %v718 = vunpack.c.l.b16 %v434
        %v719 = vunpack.c.h.b16 %v434
        %v720 = vunpack.c.l.b16 %v435
        %v721 = vunpack.c.h.b16 %v435
        %v722 = vunpack.c.l.b16 %v436
        %v723 = vunpack.c.h.b16 %v436
        %v724 = vunpack.c.l.b16 %v437
        %v725 = vunpack.c.h.b16 %v437
        %v726 = vunpack.c.l.b16 %v438
        %v727 = vunpack.c.h.b16 %v438
        %v728 = vunpack.c.l.b16 %v439
        %v729 = vunpack.c.h.b16 %v439
        %v730 = vunpack.c.l.b16 %v440
        %v731 = vunpack.c.h.b16 %v440
        %v732 = vunpack.c.l.b16 %v441
        %v733 = vunpack.c.h.b16 %v441
        %v734 = vunpack.c.l.b16 %v442
        %v735 = vunpack.c.h.b16 %v442
        %v736 = vunpack.c.l.b16 %v443
        %v737 = vunpack.c.h.b16 %v443
        %v738 = vunpack.c.l.b16 %v444
        %v739 = vunpack.c.h.b16 %v444
        %v740 = vunpack.c.l.b16 %v445
        %v741 = vunpack.c.h.b16 %v445
        %v742 = vunpack.c.l.b16 %v446
        %v743 = vunpack.c.h.b16 %v446
        %v744 = vunpack.c.l.b16 %v447
        %v745 = vunpack.c.h.b16 %v447
        %v746 = vunpack.c.l.b16 %v448
        %v747 = vunpack.c.h.b16 %v448
        %v748 = vunpack.c.l.b16 %v449
        %v749 = vunpack.c.h.b16 %v449
        %v750 = vunpack.c.l.b16 %v450
        %v751 = vunpack.c.h.b16 %v450
        %v752 = vunpack.c.l.b16 %v451
        %v753 = vunpack.c.h.b16 %v451
        %v754 = vunpack.c.l.b16 %v452
        %v755 = vunpack.c.h.b16 %v452
        %v756 = vunpack.c.l.b16 %v453
        %v757 = vunpack.c.h.b16 %v453
        %v758 = vunpack.c.l.b16 %v454
        %v759 = vunpack.c.h.b16 %v454
        %v760 = vunpack.c.l.b16 %v455
        %v761 = vunpack.c.h.b16 %v455
        %v762 = vunpack.c.l.b16 %v456
        %v763 = vunpack.c.h.b16 %v456
        %v764 = vunpack.c.l.b16 %v457
        %v765 = vunpack.c.h.b16 %v457
        %v766 = vunpack.c.l.b16 %v458
        %v767 = vunpack.c.h.b16 %v458
        %v768 = vunpack.c.l.b16 %v459
        %v769 = vunpack.c.h.b16 %v459
        %v770 = vunpack.c.l.b16 %v460
        %v771 = vunpack.c.h.b16 %v460
        %v772 = vunpack.c.l.b16 %v461
        %v773 = vunpack.c.h.b16 %v461
        %v774 = vunpack.c.l.b16 %v462
        %v775 = vunpack.c.h.b16 %v462
        %v776 = vunpack.c.l.b16 %v463
        %v777 = vunpack.c.h.b16 %v463
        %v778 = vunpack.c.l.b16 %v464
        %v779 = vunpack.c.h.b16 %v464
        %v780 = vunpack.c.l.b16 %v465
        %v781 = vunpack.c.h.b16 %v465
        %v782 = vunpack.c.l.b16 %v466
        %v783 = vunpack.c.h.b16 %v466
        %v784 = vunpack.c.l.b16 %v467
        %v785 = vunpack.c.h.b16 %v467
        %v786 = vunpack.c.l.b16 %v468
        %v787 = vunpack.c.h.b16 %v468
        %v788 = vunpack.c.l.b16 %v469
        %v789 = vunpack.c.h.b16 %v469
        %v790 = vunpack.c.l.b16 %v470
        %v791 = vunpack.c.h.b16 %v470
        %v792 = vunpack.c.l.b16 %v471
        %v793 = vunpack.c.h.b16 %v471
        %v794 = vunpack.c.l.b16 %v472
        %v795 = vunpack.c.h.b16 %v472
        %v796 = vunpack.c.l.b16 %v473
        %v797 = vunpack.c.h.b16 %v473
        %v798 = vunpack.c.l.b16 %v474
        %v799 = vunpack.c.h.b16 %v474
        %v800 = vunpack.c.l.b16 %v475
        %v801 = vunpack.c.h.b16 %v475
        %v802 = vpack.c.b16 %v614, %v610
        %v803 = vpack.c.b16 %v615, %v611
        %v804 = vpack.c.b16 %v616, %v612
        %v805 = vpack.c.b16 %v617, %v613
        %v806 = vpack.c.b16 %v622, %v618
        %v807 = vpack.c.b16 %v623, %v619
        %v808 = vpack.c.b16 %v624, %v620
        %v809 = vpack.c.b16 %v625, %v621
        %v810 = vpack.c.b16 %v630, %v626
        %v811 = vpack.c.b16 %v631, %v627
        %v812 = vpack.c.b16 %v632, %v628
        %v813 = vpack.c.b16 %v633, %v629
        %v814 = vpack.c.b16 %v638, %v634
        %v815 = vpack.c.b16 %v639, %v635
        %v816 = vpack.c.b16 %v640, %v636
        %v817 = vpack.c.b16 %v641, %v637
        %v818 = vpack.c.b16 %v646, %v642
        %v819 = vpack.c.b16 %v647, %v643
        %v820 = vpack.c.b16 %v648, %v644
        %v821 = vpack.c.b16 %v649, %v645
        %v822 = vpack.c.b16 %v654, %v650
        %v823 = vpack.c.b16 %v655, %v651
        %v824 = vpack.c.b16 %v656, %v652
        %v825 = vpack.c.b16 %v657, %v653
        %v826 = vpack.c.b16 %v662, %v658
        %v827 = vpack.c.b16 %v663, %v659
        %v828 = vpack.c.b16 %v664, %v660
        %v829 = vpack.c.b16 %v665, %v661
        %v830 = vpack.c.b16 %v670, %v666
        %v831 = vpack.c.b16 %v671, %v667
        %v832 = vpack.c.b16 %v672, %v668
        %v833 = vpack.c.b16 %v673, %v669
        %v834 = vpack.c.b16 %v678, %v674
        %v835 = vpack.c.b16 %v679, %v675
        %v836 = vpack.c.b16 %v680, %v676
        %v837 = vpack.c.b16 %v681, %v677
        %v838 = vpack.c.b16 %v686, %v682
        %v839 = vpack.c.b16 %v687, %v683
        %v840 = vpack.c.b16 %v688, %v684
        %v841 = vpack.c.b16 %v689, %v685
        %v842 = vpack.c.b16 %v694, %v690
        %v843 = vpack.c.b16 %v695, %v691
        %v844 = vpack.c.b16 %v696, %v692
        %v845 = vpack.c.b16 %v697, %v693
        %v846 = vpack.c.b16 %v702, %v698
        %v847 = vpack.c.b16 %v703, %v699
        %v848 = vpack.c.b16 %v704, %v700
        %v849 = vpack.c.b16 %v705, %v701
        %v850 = vpack.c.b16 %v710, %v706
        %v851 = vpack.c.b16 %v711, %v707
        %v852 = vpack.c.b16 %v712, %v708
        %v853 = vpack.c.b16 %v713, %v709
        %v854 = vpack.c.b16 %v718, %v714
        %v855 = vpack.c.b16 %v719, %v715
        %v856 = vpack.c.b16 %v720, %v716
        %v857 = vpack.c.b16 %v721, %v717
        %v858 = vpack.c.b16 %v726, %v722
        %v859 = vpack.c.b16 %v727, %v723
        %v860 = vpack.c.b16 %v728, %v724
        %v861 = vpack.c.b16 %v729, %v725
        %v862 = vpack.c.b16 %v734, %v730
        %v863 = vpack.c.b16 %v735, %v731
        %v864 = vpack.c.b16 %v736, %v732
        %v865 = vpack.c.b16 %v737, %v733
        %v866 = vpack.c.b16 %v742, %v738
        %v867 = vpack.c.b16 %v743, %v739
        %v868 = vpack.c.b16 %v744, %v740
        %v869 = vpack.c.b16 %v745, %v741
        %v870 = vpack.c.b16 %v750, %v746
        %v871 = vpack.c.b16 %v751, %v747
        %v872 = vpack.c.b16 %v752, %v748
        %v873 = vpack.c.b16 %v753, %v749
        %v874 = vpack.c.b16 %v758, %v754
        %v875 = vpack.c.b16 %v759, %v755
        %v876 = vpack.c.b16 %v760, %v756
        %v877 = vpack.c.b16 %v761, %v757
        %v878 = vpack.c.b16 %v766, %v762
        %v879 = vpack.c.b16 %v767, %v763
        %v880 = vpack.c.b16 %v768, %v764
        %v881 = vpack.c.b16 %v769, %v765
        %v882 = vpack.c.b16 %v774, %v770
        %v883 = vpack.c.b16 %v775, %v771
        %v884 = vpack.c.b16 %v776, %v772
        %v885 = vpack.c.b16 %v777, %v773
        %v886 = vpack.c.b16 %v782, %v778
        %v887 = vpack.c.b16 %v783, %v779
        %v888 = vpack.c.b16 %v784, %v780
        %v889 = vpack.c.b16 %v785, %v781
        %v890 = vpack.c.b16 %v790, %v786
        %v891 = vpack.c.b16 %v791, %v787
        %v892 = vpack.c.b16 %v792, %v788
        %v893 = vpack.c.b16 %v793, %v789
        %v894 = vpack.c.b16 %v798, %v794
        %v895 = vpack.c.b16 %v799, %v795
        %v896 = vpack.c.b16 %v800, %v796
        %v897 = vpack.c.b16 %v801, %v797
        %994 = vmatprep.subr.bf16.mxu0 %v831
        %995 = vmatpush1.bf16.msra.mxu0 %v830
        %996 = vmatprep.subr.bf16.mxu0 %v827
        %997 = vmatpush1.bf16.msra.mxu0 %v826
        %998 = vmatprep.subr.bf16.mxu0 %v823
        %999 = vmatpush1.bf16.msra.mxu0 %v822
        %1000 = vmatprep.subr.bf16.mxu0 %v819
        %1001 = vmatpush1.bf16.msra.mxu0 %v818
        %1002 = vmatprep.subr.bf16.mxu0 %v815
        %1003 = vmatpush1.bf16.msra.mxu0 %v814
        %1004 = vmatprep.subr.bf16.mxu0 %v811
        %1005 = vmatpush1.bf16.msra.mxu0 %v810
        %1006 = vmatprep.subr.bf16.mxu0 %v807
        %1007 = vmatpush1.bf16.msra.mxu0 %v806
        %1008 = vmatprep.subr.bf16.mxu0 %v803
        %1009 = vmatpush1.bf16.msra.mxu0 %v802
        %1010 = vmatprep.subr.bf16.mxu0 %v863
        %1011 = vmatpush2.bf16.msra.mxu0 %v862
        %1012 = vmatprep.subr.bf16.mxu0 %v859
        %1013 = vmatpush2.bf16.msra.mxu0 %v858
        %1014 = vmatprep.subr.bf16.mxu0 %v855
        %1015 = vmatpush2.bf16.msra.mxu0 %v854
        %1016 = vmatprep.subr.bf16.mxu0 %v851
        %1017 = vmatpush2.bf16.msra.mxu0 %v850
        %1018 = vmatprep.subr.bf16.mxu0 %v847
        %1019 = vmatpush2.bf16.msra.mxu0 %v846
        %1020 = vmatprep.subr.bf16.mxu0 %v843
        %1021 = vmatpush2.bf16.msra.mxu0 %v842
        %1022 = vmatprep.subr.bf16.mxu0 %v839
        %1023 = vmatpush2.bf16.msra.mxu0 %v838
        %1024 = vmatprep.subr.bf16.mxu0 %v835
        %1025 = vmatpush2.bf16.msra.mxu0 %v834
        %1026 = vmatprep.mubr.bf16.mxu0 %v509
        %1027 = vmatmul.mubr.bf16.gmra.mxu0 %v508
        %v1028 = vpop.f32.mrf.mxu0
        %v1029 = vadd.f32 %v481, %v1028
        %v1030 = vpop.f32.mrf.mxu0
        %v1031 = vadd.f32 %v485, %v1030
        %v1032 = vpop.f32.mrf.mxu0
        %v1033 = vadd.f32 %v481, %v1032
        %v1034 = vpop.f32.mrf.mxu0
        %v1035 = vadd.f32 %v485, %v1034
        %1036 = vdwg.mxu0
        %1037 = vmatprep.subr.bf16.mxu0 %v895
        %1038 = vmatpush1.bf16.msra.mxu0 %v894
        %1039 = vmatprep.subr.bf16.mxu0 %v891
        %1040 = vmatpush1.bf16.msra.mxu0 %v890
        %1041 = vmatprep.subr.bf16.mxu0 %v887
        %1042 = vmatpush1.bf16.msra.mxu0 %v886
        %1043 = vmatprep.subr.bf16.mxu0 %v883
        %1044 = vmatpush1.bf16.msra.mxu0 %v882
        %1045 = vmatprep.subr.bf16.mxu0 %v879
        %1046 = vmatpush1.bf16.msra.mxu0 %v878
        %1047 = vmatprep.subr.bf16.mxu0 %v875
        %1048 = vmatpush1.bf16.msra.mxu0 %v874
        %1049 = vmatprep.subr.bf16.mxu0 %v871
        %1050 = vmatpush1.bf16.msra.mxu0 %v870
        %1051 = vmatprep.subr.bf16.mxu0 %v867
        %1052 = vmatpush1.bf16.msra.mxu0 %v866
        %1053 = vmatprep.subr.bf16.mxu0 0
        %1054 = vmatpush2.bf16.msra.mxu0 0
        %1055 = vmatprep.subr.bf16.mxu0 0
        %1056 = vmatpush2.bf16.msra.mxu0 0
        %1057 = vmatprep.subr.bf16.mxu0 0
        %1058 = vmatpush2.bf16.msra.mxu0 0
        %1059 = vmatprep.subr.bf16.mxu0 0
        %1060 = vmatpush2.bf16.msra.mxu0 0
        %1061 = vmatprep.subr.bf16.mxu0 0
        %1062 = vmatpush2.bf16.msra.mxu0 0
        %1063 = vmatprep.subr.bf16.mxu0 0
        %1064 = vmatpush2.bf16.msra.mxu0 0
        %1065 = vmatprep.subr.bf16.mxu0 0
        %1066 = vmatpush2.bf16.msra.mxu0 0
        %1067 = vmatprep.subr.bf16.mxu0 0
        %1068 = vmatpush2.bf16.msra.mxu0 0
        %1069 = vmatprep.mubr.bf16.mxu0 0
        %1070 = vmatmul.mubr.bf16.gmra.mxu0 %v510
        %v1071 = vpop.f32.mrf.mxu0
        %v1072 = vadd.f32 %v1029, %v1071
        %v1073 = vpop.f32.mrf.mxu0
        %v1074 = vadd.f32 %v1031, %v1073
        %v1075 = vpop.f32.mrf.mxu0
        %v1076 = vadd.f32 %v1033, %v1075
        %v1077 = vpop.f32.mrf.mxu0
        %v1078 = vadd.f32 %v1035, %v1077
        %1079 = vdwg.mxu0
        %1080 = vmatprep.subr.bf16.mxu0 %v833
        %1081 = vmatpush1.bf16.msra.mxu0 %v832
        %1082 = vmatprep.subr.bf16.mxu0 %v829
        %1083 = vmatpush1.bf16.msra.mxu0 %v828
        %1084 = vmatprep.subr.bf16.mxu0 %v825
        %1085 = vmatpush1.bf16.msra.mxu0 %v824
        %1086 = vmatprep.subr.bf16.mxu0 %v821
        %1087 = vmatpush1.bf16.msra.mxu0 %v820
        %1088 = vmatprep.subr.bf16.mxu0 %v817
        %1089 = vmatpush1.bf16.msra.mxu0 %v816
        %1090 = vmatprep.subr.bf16.mxu0 %v813
        %1091 = vmatpush1.bf16.msra.mxu0 %v812
        %1092 = vmatprep.subr.bf16.mxu0 %v809
        %1093 = vmatpush1.bf16.msra.mxu0 %v808
        %1094 = vmatprep.subr.bf16.mxu0 %v805
        %1095 = vmatpush1.bf16.msra.mxu0 %v804
        %1096 = vmatprep.subr.bf16.mxu0 %v865
        %1097 = vmatpush2.bf16.msra.mxu0 %v864
        %1098 = vmatprep.subr.bf16.mxu0 %v861
        %1099 = vmatpush2.bf16.msra.mxu0 %v860
        %1100 = vmatprep.subr.bf16.mxu0 %v857
        %1101 = vmatpush2.bf16.msra.mxu0 %v856
        %1102 = vmatprep.subr.bf16.mxu0 %v853
        %1103 = vmatpush2.bf16.msra.mxu0 %v852
        %1104 = vmatprep.subr.bf16.mxu0 %v849
        %1105 = vmatpush2.bf16.msra.mxu0 %v848
        %1106 = vmatprep.subr.bf16.mxu0 %v845
        %1107 = vmatpush2.bf16.msra.mxu0 %v844
        %1108 = vmatprep.subr.bf16.mxu0 %v841
        %1109 = vmatpush2.bf16.msra.mxu0 %v840
        %1110 = vmatprep.subr.bf16.mxu0 %v837
        %1111 = vmatpush2.bf16.msra.mxu0 %v836
        %1112 = vmatprep.mubr.bf16.mxu0 %v509
        %1113 = vmatmul.mubr.bf16.gmra.mxu0 %v508
        %v1114 = vpop.f32.mrf.mxu0
        %v1115 = vadd.f32 %v489, %v1114
        %v1116 = vpop.f32.mrf.mxu0
        %v1117 = vadd.f32 %v493, %v1116
        %v1118 = vpop.f32.mrf.mxu0
        %v1119 = vadd.f32 %v489, %v1118
        %v1120 = vpop.f32.mrf.mxu0
        %v1121 = vadd.f32 %v493, %v1120
        %1122 = vdwg.mxu0
        %1123 = vmatprep.subr.bf16.mxu0 %v897
        %1124 = vmatpush1.bf16.msra.mxu0 %v896
        %1125 = vmatprep.subr.bf16.mxu0 %v893
        %1126 = vmatpush1.bf16.msra.mxu0 %v892
        %1127 = vmatprep.subr.bf16.mxu0 %v889
        %1128 = vmatpush1.bf16.msra.mxu0 %v888
        %1129 = vmatprep.subr.bf16.mxu0 %v885
        %1130 = vmatpush1.bf16.msra.mxu0 %v884
        %1131 = vmatprep.subr.bf16.mxu0 %v881
        %1132 = vmatpush1.bf16.msra.mxu0 %v880
        %1133 = vmatprep.subr.bf16.mxu0 %v877
        %1134 = vmatpush1.bf16.msra.mxu0 %v876
        %1135 = vmatprep.subr.bf16.mxu0 %v873
        %1136 = vmatpush1.bf16.msra.mxu0 %v872
        %1137 = vmatprep.subr.bf16.mxu0 %v869
        %1138 = vmatpush1.bf16.msra.mxu0 %v868
        %1139 = vmatprep.subr.bf16.mxu0 0
        %1140 = vmatpush2.bf16.msra.mxu0 0
        %1141 = vmatprep.subr.bf16.mxu0 0
        %1142 = vmatpush2.bf16.msra.mxu0 0
        %1143 = vmatprep.subr.bf16.mxu0 0
        %1144 = vmatpush2.bf16.msra.mxu0 0
        %1145 = vmatprep.subr.bf16.mxu0 0
        %1146 = vmatpush2.bf16.msra.mxu0 0
        %1147 = vmatprep.subr.bf16.mxu0 0
        %1148 = vmatpush2.bf16.msra.mxu0 0
        %1149 = vmatprep.subr.bf16.mxu0 0
        %1150 = vmatpush2.bf16.msra.mxu0 0
        %1151 = vmatprep.subr.bf16.mxu0 0
        %1152 = vmatpush2.bf16.msra.mxu0 0
        %1153 = vmatprep.subr.bf16.mxu0 0
        %1154 = vmatpush2.bf16.msra.mxu0 0
        %1155 = vmatprep.mubr.bf16.mxu0 0
        %1156 = vmatmul.mubr.bf16.gmra.mxu0 %v510
        %v1157 = vpop.f32.mrf.mxu0
        %v1158 = vadd.f32 %v1115, %v1157
        %v1159 = vpop.f32.mrf.mxu0
        %v1160 = vadd.f32 %v1117, %v1159
        %v1161 = vpop.f32.mrf.mxu0
        %v1162 = vadd.f32 %v1119, %v1161
        %v1163 = vpop.f32.mrf.mxu0
        %v1164 = vadd.f32 %v1121, %v1163
        %1165 = vdwg.mxu0
        %v1166 = vmax.f32 %v1072, 0.0
        %v1167 = vmax.f32 %v1074, 0.0
        %v1168 = vmax.f32 %v1158, 0.0
        %v1169 = vmax.f32 %v1160, 0.0
        %v1170 = vmax.f32 %v1076, 0.0
        %v1171 = vmax.f32 %v1078, 0.0
        %v1172 = vmax.f32 %v1162, 0.0
        %v1173 = vmax.f32 %v1164, 0.0
        %v1174 = vld [vmem:[#allocation2] sm:$0xff]
        %v1175 = vld [vmem:[#allocation2 + $0x8] sm:$0xff]
        %v1176 = vld [vmem:[#allocation2 + $0x10] sm:$0xff]
        %v1177 = vld [vmem:[#allocation2 + $0x18] sm:$0xff]
        %v1178 = vld [vmem:[#allocation2 + $0x20] sm:$0xff]
        %v1179 = vld [vmem:[#allocation2 + $0x28] sm:$0xff]
        %v1180 = vpack.c.bf16 %v1170, %v1166
        %v1181 = vpack.c.bf16 %v1171, %v1167
        %v1182 = vpack.c.bf16 %v1172, %v1168
        %v1183 = vpack.c.bf16 %v1173, %v1169
        %v1184 = vld [vmem:[%s324] sm:$0xff]
        %v1185 = vld [vmem:[%s324 + $0x8] sm:$0xf]
        %v1186 = vld [vmem:[%s324 + $0xc] sm:$0xff]
        %v1187 = vld [vmem:[%s324 + $0x14] sm:$0xf]
        %v1188 = vld [vmem:[%s324 + $0x18] sm:$0xff]
        %v1189 = vld [vmem:[%s324 + $0x20] sm:$0xf]
        %v1190 = vld [vmem:[%s324 + $0x24] sm:$0xff]
        %v1191 = vld [vmem:[%s324 + $0x2c] sm:$0xf]
        %v1192 = vld [vmem:[%s324 + $0x30] sm:$0xff]
        %v1193 = vld [vmem:[%s324 + $0x38] sm:$0xf]
        %v1194 = vld [vmem:[%s324 + $0x3c] sm:$0xff]
        %v1195 = vld [vmem:[%s324 + $0x44] sm:$0xf]
        %v1196 = vld [vmem:[%s324 + $0x48] sm:$0xff]
        %v1197 = vld [vmem:[%s324 + $0x50] sm:$0xf]
        %v1198 = vld [vmem:[%s324 + $0x54] sm:$0xff]
        %v1199 = vld [vmem:[%s324 + $0x5c] sm:$0xf]
        %v1200 = vld [vmem:[%s324 + $0x60] sm:$0xff]
        %v1201 = vld [vmem:[%s324 + $0x68] sm:$0xf]
        %v1202 = vld [vmem:[%s324 + $0x6c] sm:$0xff]
        %v1203 = vld [vmem:[%s324 + $0x74] sm:$0xf]
        %v1204 = vld [vmem:[%s324 + $0x78] sm:$0xff]
        %v1205 = vld [vmem:[%s324 + $0x80] sm:$0xf]
        %v1206 = vld [vmem:[%s324 + $0x84] sm:$0xff]
        %v1207 = vld [vmem:[%s324 + $0x8c] sm:$0xf]
        %v1208 = vld [vmem:[%s324 + $0x90] sm:$0xff]
        %v1209 = vld [vmem:[%s324 + $0x98] sm:$0xf]
        %v1210 = vld [vmem:[%s324 + $0x9c] sm:$0xff]
        %v1211 = vld [vmem:[%s324 + $0xa4] sm:$0xf]
        %v1212 = vld [vmem:[%s324 + $0xa8] sm:$0xff]
        %v1213 = vld [vmem:[%s324 + $0xb0] sm:$0xf]
        %v1214 = vld [vmem:[%s324 + $0xb4] sm:$0xff]
        %v1215 = vld [vmem:[%s324 + $0xbc] sm:$0xf]
        %v1216 = vld [vmem:[%s324 + $0xc0] sm:$0xff]
        %v1217 = vld [vmem:[%s324 + $0xc8] sm:$0xf]
        %v1218 = vld [vmem:[%s324 + $0xcc] sm:$0xff]
        %v1219 = vld [vmem:[%s324 + $0xd4] sm:$0xf]
        %v1220 = vld [vmem:[%s324 + $0xd8] sm:$0xff]
        %v1221 = vld [vmem:[%s324 + $0xe0] sm:$0xf]
        %v1222 = vld [vmem:[%s324 + $0xe4] sm:$0xff]
        %v1223 = vld [vmem:[%s324 + $0xec] sm:$0xf]
        %v1224 = vld [vmem:[%s324 + $0xf0] sm:$0xff]
        %v1225 = vld [vmem:[%s324 + $0xf8] sm:$0xf]
        %v1226 = vld [vmem:[%s324 + $0xfc] sm:$0xff]
        %v1227 = vld [vmem:[%s324 + $0x104] sm:$0xf]
        %v1228 = vld [vmem:[%s324 + $0x108] sm:$0xff]
        %v1229 = vld [vmem:[%s324 + $0x110] sm:$0xf]
        %v1230 = vld [vmem:[%s324 + $0x114] sm:$0xff]
        %v1231 = vld [vmem:[%s324 + $0x11c] sm:$0xf]
        %v1232 = vld [vmem:[%s324 + $0x120] sm:$0xff]
        %v1233 = vld [vmem:[%s324 + $0x128] sm:$0xf]
        %v1234 = vld [vmem:[%s324 + $0x12c] sm:$0xff]
        %v1235 = vld [vmem:[%s324 + $0x134] sm:$0xf]
        %v1236 = vld [vmem:[%s324 + $0x138] sm:$0xff]
        %v1237 = vld [vmem:[%s324 + $0x140] sm:$0xf]
        %v1238 = vld [vmem:[%s324 + $0x144] sm:$0xff]
        %v1239 = vld [vmem:[%s324 + $0x14c] sm:$0xf]
        %v1240 = vld [vmem:[%s324 + $0x150] sm:$0xff]
        %v1241 = vld [vmem:[%s324 + $0x158] sm:$0xf]
        %v1242 = vld [vmem:[%s324 + $0x15c] sm:$0xff]
        %v1243 = vld [vmem:[%s324 + $0x164] sm:$0xf]
        %v1244 = vld [vmem:[%s324 + $0x168] sm:$0xff]
        %v1245 = vld [vmem:[%s324 + $0x170] sm:$0xf]
        %v1246 = vld [vmem:[%s324 + $0x174] sm:$0xff]
        %v1247 = vld [vmem:[%s324 + $0x17c] sm:$0xf]
        %v1248 = vld [vmem:[%s324 + $0x180] sm:$0xff]
        %v1249 = vld [vmem:[%s324 + $0x188] sm:$0xf]
        %v1250 = vld [vmem:[%s324 + $0x18c] sm:$0xff]
        %v1251 = vld [vmem:[%s324 + $0x194] sm:$0xf]
        %v1252 = vld [vmem:[%s324 + $0x198] sm:$0xff]
        %v1253 = vld [vmem:[%s324 + $0x1a0] sm:$0xf]
        %v1254 = vld [vmem:[%s324 + $0x1a4] sm:$0xff]
        %v1255 = vld [vmem:[%s324 + $0x1ac] sm:$0xf]
        %v1256 = vld [vmem:[%s324 + $0x1b0] sm:$0xff]
        %v1257 = vld [vmem:[%s324 + $0x1b8] sm:$0xf]
        %v1258 = vld [vmem:[%s324 + $0x1bc] sm:$0xff]
        %v1259 = vld [vmem:[%s324 + $0x1c4] sm:$0xf]
        %v1260 = vld [vmem:[%s324 + $0x1c8] sm:$0xff]
        %v1261 = vld [vmem:[%s324 + $0x1d0] sm:$0xf]
        %v1262 = vld [vmem:[%s324 + $0x1d4] sm:$0xff]
        %v1263 = vld [vmem:[%s324 + $0x1dc] sm:$0xf]
        %v1264 = vld [vmem:[%s324 + $0x1e0] sm:$0xff]
        %v1265 = vld [vmem:[%s324 + $0x1e8] sm:$0xf]
        %v1266 = vld [vmem:[%s324 + $0x1ec] sm:$0xff]
        %v1267 = vld [vmem:[%s324 + $0x1f4] sm:$0xf]
        %v1268 = vld [vmem:[%s324 + $0x1f8] sm:$0xff]
        %v1269 = vld [vmem:[%s324 + $0x200] sm:$0xf]
        %v1270 = vld [vmem:[%s324 + $0x204] sm:$0xff]
        %v1271 = vld [vmem:[%s324 + $0x20c] sm:$0xf]
        %v1272 = vld [vmem:[%s324 + $0x210] sm:$0xff]
        %v1273 = vld [vmem:[%s324 + $0x218] sm:$0xf]
        %v1274 = vld [vmem:[%s324 + $0x21c] sm:$0xff]
        %v1275 = vld [vmem:[%s324 + $0x224] sm:$0xf]
        %v1276 = vld [vmem:[%s324 + $0x228] sm:$0xff]
        %v1277 = vld [vmem:[%s324 + $0x230] sm:$0xf]
        %v1278 = vld [vmem:[%s324 + $0x234] sm:$0xff]
        %v1279 = vld [vmem:[%s324 + $0x23c] sm:$0xf]
        %v1280 = vld [vmem:[%s324 + $0x240] sm:$0xff]
        %v1281 = vld [vmem:[%s324 + $0x248] sm:$0xf]
        %v1282 = vld [vmem:[%s324 + $0x24c] sm:$0xff]
        %v1283 = vld [vmem:[%s324 + $0x254] sm:$0xf]
        %v1284 = vld [vmem:[%s324 + $0x258] sm:$0xff]
        %v1285 = vld [vmem:[%s324 + $0x260] sm:$0xf]
        %v1286 = vld [vmem:[%s324 + $0x264] sm:$0xff]
        %v1287 = vld [vmem:[%s324 + $0x26c] sm:$0xf]
        %v1288 = vld [vmem:[%s324 + $0x270] sm:$0xff]
        %v1289 = vld [vmem:[%s324 + $0x278] sm:$0xf]
        %v1290 = vld [vmem:[%s324 + $0x27c] sm:$0xff]
        %v1291 = vld [vmem:[%s324 + $0x284] sm:$0xf]
        %v1292 = vld [vmem:[%s324 + $0x288] sm:$0xff]
        %v1293 = vld [vmem:[%s324 + $0x290] sm:$0xf]
        %v1294 = vld [vmem:[%s324 + $0x294] sm:$0xff]
        %v1295 = vld [vmem:[%s324 + $0x29c] sm:$0xf]
        %v1296 = vld [vmem:[%s324 + $0x2a0] sm:$0xff]
        %v1297 = vld [vmem:[%s324 + $0x2a8] sm:$0xf]
        %v1298 = vld [vmem:[%s324 + $0x2ac] sm:$0xff]
        %v1299 = vld [vmem:[%s324 + $0x2b4] sm:$0xf]
        %v1300 = vld [vmem:[%s324 + $0x2b8] sm:$0xff]
        %v1301 = vld [vmem:[%s324 + $0x2c0] sm:$0xf]
        %v1302 = vld [vmem:[%s324 + $0x2c4] sm:$0xff]
        %v1303 = vld [vmem:[%s324 + $0x2cc] sm:$0xf]
        %v1304 = vld [vmem:[%s324 + $0x2d0] sm:$0xff]
        %v1305 = vld [vmem:[%s324 + $0x2d8] sm:$0xf]
        %v1306 = vld [vmem:[%s324 + $0x2dc] sm:$0xff]
        %v1307 = vld [vmem:[%s324 + $0x2e4] sm:$0xf]
        %v1308 = vld [vmem:[%s324 + $0x2e8] sm:$0xff]
        %v1309 = vld [vmem:[%s324 + $0x2f0] sm:$0xf]
        %v1310 = vld [vmem:[%s324 + $0x2f4] sm:$0xff]
        %v1311 = vld [vmem:[%s324 + $0x2fc] sm:$0xf]
        %v1440 = vunpack.c.l.b16 %v1184
        %v1441 = vunpack.c.h.b16 %v1184
        %v1442 = vunpack.c.l.b16 %v1185
        %v1443 = vunpack.c.l.b16 %v1186
        %v1444 = vunpack.c.h.b16 %v1186
        %v1445 = vunpack.c.l.b16 %v1187
        %v1446 = vunpack.c.l.b16 %v1188
        %v1447 = vunpack.c.h.b16 %v1188
        %v1448 = vunpack.c.l.b16 %v1189
        %v1449 = vunpack.c.l.b16 %v1190
        %v1450 = vunpack.c.h.b16 %v1190
        %v1451 = vunpack.c.l.b16 %v1191
        %v1452 = vunpack.c.l.b16 %v1192
        %v1453 = vunpack.c.h.b16 %v1192
        %v1454 = vunpack.c.l.b16 %v1193
        %v1455 = vunpack.c.l.b16 %v1194
        %v1456 = vunpack.c.h.b16 %v1194
        %v1457 = vunpack.c.l.b16 %v1195
        %v1458 = vunpack.c.l.b16 %v1196
        %v1459 = vunpack.c.h.b16 %v1196
        %v1460 = vunpack.c.l.b16 %v1197
        %v1461 = vunpack.c.l.b16 %v1198
        %v1462 = vunpack.c.h.b16 %v1198
        %v1463 = vunpack.c.l.b16 %v1199
        %v1464 = vunpack.c.l.b16 %v1200
        %v1465 = vunpack.c.h.b16 %v1200
        %v1466 = vunpack.c.l.b16 %v1201
        %v1467 = vunpack.c.l.b16 %v1202
        %v1468 = vunpack.c.h.b16 %v1202
        %v1469 = vunpack.c.l.b16 %v1203
        %v1470 = vunpack.c.l.b16 %v1204
        %v1471 = vunpack.c.h.b16 %v1204
        %v1472 = vunpack.c.l.b16 %v1205
        %v1473 = vunpack.c.l.b16 %v1206
        %v1474 = vunpack.c.h.b16 %v1206
        %v1475 = vunpack.c.l.b16 %v1207
        %v1476 = vunpack.c.l.b16 %v1208
        %v1477 = vunpack.c.h.b16 %v1208
        %v1478 = vunpack.c.l.b16 %v1209
        %v1479 = vunpack.c.l.b16 %v1210
        %v1480 = vunpack.c.h.b16 %v1210
        %v1481 = vunpack.c.l.b16 %v1211
        %v1482 = vunpack.c.l.b16 %v1212
        %v1483 = vunpack.c.h.b16 %v1212
        %v1484 = vunpack.c.l.b16 %v1213
        %v1485 = vunpack.c.l.b16 %v1214
        %v1486 = vunpack.c.h.b16 %v1214
        %v1487 = vunpack.c.l.b16 %v1215
        %v1488 = vunpack.c.l.b16 %v1216
        %v1489 = vunpack.c.h.b16 %v1216
        %v1490 = vunpack.c.l.b16 %v1217
        %v1491 = vunpack.c.l.b16 %v1218
        %v1492 = vunpack.c.h.b16 %v1218
        %v1493 = vunpack.c.l.b16 %v1219
        %v1494 = vunpack.c.l.b16 %v1220
        %v1495 = vunpack.c.h.b16 %v1220
        %v1496 = vunpack.c.l.b16 %v1221
        %v1497 = vunpack.c.l.b16 %v1222
        %v1498 = vunpack.c.h.b16 %v1222
        %v1499 = vunpack.c.l.b16 %v1223
        %v1500 = vunpack.c.l.b16 %v1224
        %v1501 = vunpack.c.h.b16 %v1224
        %v1502 = vunpack.c.l.b16 %v1225
        %v1503 = vunpack.c.l.b16 %v1226
        %v1504 = vunpack.c.h.b16 %v1226
        %v1505 = vunpack.c.l.b16 %v1227
        %v1506 = vunpack.c.l.b16 %v1228
        %v1507 = vunpack.c.h.b16 %v1228
        %v1508 = vunpack.c.l.b16 %v1229
        %v1509 = vunpack.c.l.b16 %v1230
        %v1510 = vunpack.c.h.b16 %v1230
        %v1511 = vunpack.c.l.b16 %v1231
        %v1512 = vunpack.c.l.b16 %v1232
        %v1513 = vunpack.c.h.b16 %v1232
        %v1514 = vunpack.c.l.b16 %v1233
        %v1515 = vunpack.c.l.b16 %v1234
        %v1516 = vunpack.c.h.b16 %v1234
        %v1517 = vunpack.c.l.b16 %v1235
        %v1518 = vunpack.c.l.b16 %v1236
        %v1519 = vunpack.c.h.b16 %v1236
        %v1520 = vunpack.c.l.b16 %v1237
        %v1521 = vunpack.c.l.b16 %v1238
        %v1522 = vunpack.c.h.b16 %v1238
        %v1523 = vunpack.c.l.b16 %v1239
        %v1524 = vunpack.c.l.b16 %v1240
        %v1525 = vunpack.c.h.b16 %v1240
        %v1526 = vunpack.c.l.b16 %v1241
        %v1527 = vunpack.c.l.b16 %v1242
        %v1528 = vunpack.c.h.b16 %v1242
        %v1529 = vunpack.c.l.b16 %v1243
        %v1530 = vunpack.c.l.b16 %v1244
        %v1531 = vunpack.c.h.b16 %v1244
        %v1532 = vunpack.c.l.b16 %v1245
        %v1533 = vunpack.c.l.b16 %v1246
        %v1534 = vunpack.c.h.b16 %v1246
        %v1535 = vunpack.c.l.b16 %v1247
        %v1536 = vunpack.c.l.b16 %v1248
        %v1537 = vunpack.c.h.b16 %v1248
        %v1538 = vunpack.c.l.b16 %v1249
        %v1539 = vunpack.c.l.b16 %v1250
        %v1540 = vunpack.c.h.b16 %v1250
        %v1541 = vunpack.c.l.b16 %v1251
        %v1542 = vunpack.c.l.b16 %v1252
        %v1543 = vunpack.c.h.b16 %v1252
        %v1544 = vunpack.c.l.b16 %v1253
        %v1545 = vunpack.c.l.b16 %v1254
        %v1546 = vunpack.c.h.b16 %v1254
        %v1547 = vunpack.c.l.b16 %v1255
        %v1548 = vunpack.c.l.b16 %v1256
        %v1549 = vunpack.c.h.b16 %v1256
        %v1550 = vunpack.c.l.b16 %v1257
        %v1551 = vunpack.c.l.b16 %v1258
        %v1552 = vunpack.c.h.b16 %v1258
        %v1553 = vunpack.c.l.b16 %v1259
        %v1554 = vunpack.c.l.b16 %v1260
        %v1555 = vunpack.c.h.b16 %v1260
        %v1556 = vunpack.c.l.b16 %v1261
        %v1557 = vunpack.c.l.b16 %v1262
        %v1558 = vunpack.c.h.b16 %v1262
        %v1559 = vunpack.c.l.b16 %v1263
        %v1560 = vunpack.c.l.b16 %v1264
        %v1561 = vunpack.c.h.b16 %v1264
        %v1562 = vunpack.c.l.b16 %v1265
        %v1563 = vunpack.c.l.b16 %v1266
        %v1564 = vunpack.c.h.b16 %v1266
        %v1565 = vunpack.c.l.b16 %v1267
        %v1566 = vunpack.c.l.b16 %v1268
        %v1567 = vunpack.c.h.b16 %v1268
        %v1568 = vunpack.c.l.b16 %v1269
        %v1569 = vunpack.c.l.b16 %v1270
        %v1570 = vunpack.c.h.b16 %v1270
        %v1571 = vunpack.c.l.b16 %v1271
        %v1572 = vunpack.c.l.b16 %v1272
        %v1573 = vunpack.c.h.b16 %v1272
        %v1574 = vunpack.c.l.b16 %v1273
        %v1575 = vunpack.c.l.b16 %v1274
        %v1576 = vunpack.c.h.b16 %v1274
        %v1577 = vunpack.c.l.b16 %v1275
        %v1578 = vunpack.c.l.b16 %v1276
        %v1579 = vunpack.c.h.b16 %v1276
        %v1580 = vunpack.c.l.b16 %v1277
        %v1581 = vunpack.c.l.b16 %v1278
        %v1582 = vunpack.c.h.b16 %v1278
        %v1583 = vunpack.c.l.b16 %v1279
        %v1584 = vunpack.c.l.b16 %v1280
        %v1585 = vunpack.c.h.b16 %v1280
        %v1586 = vunpack.c.l.b16 %v1281
        %v1587 = vunpack.c.l.b16 %v1282
        %v1588 = vunpack.c.h.b16 %v1282
        %v1589 = vunpack.c.l.b16 %v1283
        %v1590 = vunpack.c.l.b16 %v1284
        %v1591 = vunpack.c.h.b16 %v1284
        %v1592 = vunpack.c.l.b16 %v1285
        %v1593 = vunpack.c.l.b16 %v1286
        %v1594 = vunpack.c.h.b16 %v1286
        %v1595 = vunpack.c.l.b16 %v1287
        %v1596 = vunpack.c.l.b16 %v1288
        %v1597 = vunpack.c.h.b16 %v1288
        %v1598 = vunpack.c.l.b16 %v1289
        %v1599 = vunpack.c.l.b16 %v1290
        %v1600 = vunpack.c.h.b16 %v1290
        %v1601 = vunpack.c.l.b16 %v1291
        %v1602 = vunpack.c.l.b16 %v1292
        %v1603 = vunpack.c.h.b16 %v1292
        %v1604 = vunpack.c.l.b16 %v1293
        %v1605 = vunpack.c.l.b16 %v1294
        %v1606 = vunpack.c.h.b16 %v1294
        %v1607 = vunpack.c.l.b16 %v1295
        %v1608 = vunpack.c.l.b16 %v1296
        %v1609 = vunpack.c.h.b16 %v1296
        %v1610 = vunpack.c.l.b16 %v1297
        %v1611 = vunpack.c.l.b16 %v1298
        %v1612 = vunpack.c.h.b16 %v1298
        %v1613 = vunpack.c.l.b16 %v1299
        %v1614 = vunpack.c.l.b16 %v1300
        %v1615 = vunpack.c.h.b16 %v1300
        %v1616 = vunpack.c.l.b16 %v1301
        %v1617 = vunpack.c.l.b16 %v1302
        %v1618 = vunpack.c.h.b16 %v1302
        %v1619 = vunpack.c.l.b16 %v1303
        %v1620 = vunpack.c.l.b16 %v1304
        %v1621 = vunpack.c.h.b16 %v1304
        %v1622 = vunpack.c.l.b16 %v1305
        %v1623 = vunpack.c.l.b16 %v1306
        %v1624 = vunpack.c.h.b16 %v1306
        %v1625 = vunpack.c.l.b16 %v1307
        %v1626 = vunpack.c.l.b16 %v1308
        %v1627 = vunpack.c.h.b16 %v1308
        %v1628 = vunpack.c.l.b16 %v1309
        %v1629 = vunpack.c.l.b16 %v1310
        %v1630 = vunpack.c.h.b16 %v1310
        %v1631 = vunpack.c.l.b16 %v1311
        %v1632 = vpack.c.b16 %v1443, %v1440
        %v1633 = vpack.c.b16 %v1444, %v1441
        %v1634 = vpack.c.b16 %v1445, %v1442
        %v1635 = vpack.c.b16 %v1449, %v1446
        %v1636 = vpack.c.b16 %v1450, %v1447
        %v1637 = vpack.c.b16 %v1451, %v1448
        %v1638 = vpack.c.b16 %v1455, %v1452
        %v1639 = vpack.c.b16 %v1456, %v1453
        %v1640 = vpack.c.b16 %v1457, %v1454
        %v1641 = vpack.c.b16 %v1461, %v1458
        %v1642 = vpack.c.b16 %v1462, %v1459
        %v1643 = vpack.c.b16 %v1463, %v1460
        %v1644 = vpack.c.b16 %v1467, %v1464
        %v1645 = vpack.c.b16 %v1468, %v1465
        %v1646 = vpack.c.b16 %v1469, %v1466
        %v1647 = vpack.c.b16 %v1473, %v1470
        %v1648 = vpack.c.b16 %v1474, %v1471
        %v1649 = vpack.c.b16 %v1475, %v1472
        %v1650 = vpack.c.b16 %v1479, %v1476
        %v1651 = vpack.c.b16 %v1480, %v1477
        %v1652 = vpack.c.b16 %v1481, %v1478
        %v1653 = vpack.c.b16 %v1485, %v1482
        %v1654 = vpack.c.b16 %v1486, %v1483
        %v1655 = vpack.c.b16 %v1487, %v1484
        %v1656 = vpack.c.b16 %v1491, %v1488
        %v1657 = vpack.c.b16 %v1492, %v1489
        %v1658 = vpack.c.b16 %v1493, %v1490
        %v1659 = vpack.c.b16 %v1497, %v1494
        %v1660 = vpack.c.b16 %v1498, %v1495
        %v1661 = vpack.c.b16 %v1499, %v1496
        %v1662 = vpack.c.b16 %v1503, %v1500
        %v1663 = vpack.c.b16 %v1504, %v1501
        %v1664 = vpack.c.b16 %v1505, %v1502
        %v1665 = vpack.c.b16 %v1509, %v1506
        %v1666 = vpack.c.b16 %v1510, %v1507
        %v1667 = vpack.c.b16 %v1511, %v1508
        %v1668 = vpack.c.b16 %v1515, %v1512
        %v1669 = vpack.c.b16 %v1516, %v1513
        %v1670 = vpack.c.b16 %v1517, %v1514
        %v1671 = vpack.c.b16 %v1521, %v1518
        %v1672 = vpack.c.b16 %v1522, %v1519
        %v1673 = vpack.c.b16 %v1523, %v1520
        %v1674 = vpack.c.b16 %v1527, %v1524
        %v1675 = vpack.c.b16 %v1528, %v1525
        %v1676 = vpack.c.b16 %v1529, %v1526
        %v1677 = vpack.c.b16 %v1533, %v1530
        %v1678 = vpack.c.b16 %v1534, %v1531
        %v1679 = vpack.c.b16 %v1535, %v1532
        %v1680 = vpack.c.b16 %v1539, %v1536
        %v1681 = vpack.c.b16 %v1540, %v1537
        %v1682 = vpack.c.b16 %v1541, %v1538
        %v1683 = vpack.c.b16 %v1545, %v1542
        %v1684 = vpack.c.b16 %v1546, %v1543
        %v1685 = vpack.c.b16 %v1547, %v1544
        %v1686 = vpack.c.b16 %v1551, %v1548
        %v1687 = vpack.c.b16 %v1552, %v1549
        %v1688 = vpack.c.b16 %v1553, %v1550
        %v1689 = vpack.c.b16 %v1557, %v1554
        %v1690 = vpack.c.b16 %v1558, %v1555
        %v1691 = vpack.c.b16 %v1559, %v1556
        %v1692 = vpack.c.b16 %v1563, %v1560
        %v1693 = vpack.c.b16 %v1564, %v1561
        %v1694 = vpack.c.b16 %v1565, %v1562
        %v1695 = vpack.c.b16 %v1569, %v1566
        %v1696 = vpack.c.b16 %v1570, %v1567
        %v1697 = vpack.c.b16 %v1571, %v1568
        %v1698 = vpack.c.b16 %v1575, %v1572
        %v1699 = vpack.c.b16 %v1576, %v1573
        %v1700 = vpack.c.b16 %v1577, %v1574
        %v1701 = vpack.c.b16 %v1581, %v1578
        %v1702 = vpack.c.b16 %v1582, %v1579
        %v1703 = vpack.c.b16 %v1583, %v1580
        %v1704 = vpack.c.b16 %v1587, %v1584
        %v1705 = vpack.c.b16 %v1588, %v1585
        %v1706 = vpack.c.b16 %v1589, %v1586
        %v1707 = vpack.c.b16 %v1593, %v1590
        %v1708 = vpack.c.b16 %v1594, %v1591
        %v1709 = vpack.c.b16 %v1595, %v1592
        %v1710 = vpack.c.b16 %v1599, %v1596
        %v1711 = vpack.c.b16 %v1600, %v1597
        %v1712 = vpack.c.b16 %v1601, %v1598
        %v1713 = vpack.c.b16 %v1605, %v1602
        %v1714 = vpack.c.b16 %v1606, %v1603
        %v1715 = vpack.c.b16 %v1607, %v1604
        %v1716 = vpack.c.b16 %v1611, %v1608
        %v1717 = vpack.c.b16 %v1612, %v1609
        %v1718 = vpack.c.b16 %v1613, %v1610
        %v1719 = vpack.c.b16 %v1617, %v1614
        %v1720 = vpack.c.b16 %v1618, %v1615
        %v1721 = vpack.c.b16 %v1619, %v1616
        %v1722 = vpack.c.b16 %v1623, %v1620
        %v1723 = vpack.c.b16 %v1624, %v1621
        %v1724 = vpack.c.b16 %v1625, %v1622
        %v1725 = vpack.c.b16 %v1629, %v1626
        %v1726 = vpack.c.b16 %v1630, %v1627
        %v1727 = vpack.c.b16 %v1631, %v1628
        %1824 = vmatprep.subr.bf16.mxu0 %v1654
        %1825 = vmatpush1.bf16.msra.mxu0 %v1653
        %1826 = vmatprep.subr.bf16.mxu0 %v1651
        %1827 = vmatpush1.bf16.msra.mxu0 %v1650
        %1828 = vmatprep.subr.bf16.mxu0 %v1648
        %1829 = vmatpush1.bf16.msra.mxu0 %v1647
        %1830 = vmatprep.subr.bf16.mxu0 %v1645
        %1831 = vmatpush1.bf16.msra.mxu0 %v1644
        %1832 = vmatprep.subr.bf16.mxu0 %v1642
        %1833 = vmatpush1.bf16.msra.mxu0 %v1641
        %1834 = vmatprep.subr.bf16.mxu0 %v1639
        %1835 = vmatpush1.bf16.msra.mxu0 %v1638
        %1836 = vmatprep.subr.bf16.mxu0 %v1636
        %1837 = vmatpush1.bf16.msra.mxu0 %v1635
        %1838 = vmatprep.subr.bf16.mxu0 %v1633
        %1839 = vmatpush1.bf16.msra.mxu0 %v1632
        %1840 = vmatprep.subr.bf16.mxu0 %v1678
        %1841 = vmatpush2.bf16.msra.mxu0 %v1677
        %1842 = vmatprep.subr.bf16.mxu0 %v1675
        %1843 = vmatpush2.bf16.msra.mxu0 %v1674
        %1844 = vmatprep.subr.bf16.mxu0 %v1672
        %1845 = vmatpush2.bf16.msra.mxu0 %v1671
        %1846 = vmatprep.subr.bf16.mxu0 %v1669
        %1847 = vmatpush2.bf16.msra.mxu0 %v1668
        %1848 = vmatprep.subr.bf16.mxu0 %v1666
        %1849 = vmatpush2.bf16.msra.mxu0 %v1665
        %1850 = vmatprep.subr.bf16.mxu0 %v1663
        %1851 = vmatpush2.bf16.msra.mxu0 %v1662
        %1852 = vmatprep.subr.bf16.mxu0 %v1660
        %1853 = vmatpush2.bf16.msra.mxu0 %v1659
        %1854 = vmatprep.subr.bf16.mxu0 %v1657
        %1855 = vmatpush2.bf16.msra.mxu0 %v1656
        %1856 = vmatprep.mubr.bf16.mxu0 %v1181
        %1857 = vmatmul.mubr.bf16.gmra.mxu0 %v1180
        %v1858 = vpop.f32.mrf.mxu0
        %v1859 = vadd.f32 0.0, %v1858
        %v1860 = vpop.f32.mrf.mxu0
        %v1861 = vadd.f32 0.0, %v1860
        %v1862 = vpop.f32.mrf.mxu0
        %v1863 = vadd.f32 0.0, %v1862
        %v1864 = vpop.f32.mrf.mxu0
        %v1865 = vadd.f32 0.0, %v1864
        %1866 = vdwg.mxu0
        %1867 = vmatprep.subr.bf16.mxu0 %v1702
        %1868 = vmatpush1.bf16.msra.mxu0 %v1701
        %1869 = vmatprep.subr.bf16.mxu0 %v1699
        %1870 = vmatpush1.bf16.msra.mxu0 %v1698
        %1871 = vmatprep.subr.bf16.mxu0 %v1696
        %1872 = vmatpush1.bf16.msra.mxu0 %v1695
        %1873 = vmatprep.subr.bf16.mxu0 %v1693
        %1874 = vmatpush1.bf16.msra.mxu0 %v1692
        %1875 = vmatprep.subr.bf16.mxu0 %v1690
        %1876 = vmatpush1.bf16.msra.mxu0 %v1689
        %1877 = vmatprep.subr.bf16.mxu0 %v1687
        %1878 = vmatpush1.bf16.msra.mxu0 %v1686
        %1879 = vmatprep.subr.bf16.mxu0 %v1684
        %1880 = vmatpush1.bf16.msra.mxu0 %v1683
        %1881 = vmatprep.subr.bf16.mxu0 %v1681
        %1882 = vmatpush1.bf16.msra.mxu0 %v1680
        %1883 = vmatprep.subr.bf16.mxu0 %v1726
        %1884 = vmatpush2.bf16.msra.mxu0 %v1725
        %1885 = vmatprep.subr.bf16.mxu0 %v1723
        %1886 = vmatpush2.bf16.msra.mxu0 %v1722
        %1887 = vmatprep.subr.bf16.mxu0 %v1720
        %1888 = vmatpush2.bf16.msra.mxu0 %v1719
        %1889 = vmatprep.subr.bf16.mxu0 %v1717
        %1890 = vmatpush2.bf16.msra.mxu0 %v1716
        %1891 = vmatprep.subr.bf16.mxu0 %v1714
        %1892 = vmatpush2.bf16.msra.mxu0 %v1713
        %1893 = vmatprep.subr.bf16.mxu0 %v1711
        %1894 = vmatpush2.bf16.msra.mxu0 %v1710
        %1895 = vmatprep.subr.bf16.mxu0 %v1708
        %1896 = vmatpush2.bf16.msra.mxu0 %v1707
        %1897 = vmatprep.subr.bf16.mxu0 %v1705
        %1898 = vmatpush2.bf16.msra.mxu0 %v1704
        %1899 = vmatprep.mubr.bf16.mxu0 %v1183
        %1900 = vmatmul.mubr.bf16.gmra.mxu0 %v1182
        %v1901 = vpop.f32.mrf.mxu0
        %v1902 = vadd.f32 %v1859, %v1901
        %v1903 = vpop.f32.mrf.mxu0
        %v1904 = vadd.f32 %v1861, %v1903
        %v1905 = vpop.f32.mrf.mxu0
        %v1906 = vadd.f32 %v1863, %v1905
        %v1907 = vpop.f32.mrf.mxu0
        %v1908 = vadd.f32 %v1865, %v1907
        %1909 = vdwg.mxu0
        %1910 = vmatprep.subr.bf16.mxu0 0
        %1911 = vmatpush1.bf16.msra.mxu0 %v1655
        %1912 = vmatprep.subr.bf16.mxu0 0
        %1913 = vmatpush1.bf16.msra.mxu0 %v1652
        %1914 = vmatprep.subr.bf16.mxu0 0
        %1915 = vmatpush1.bf16.msra.mxu0 %v1649
        %1916 = vmatprep.subr.bf16.mxu0 0
        %1917 = vmatpush1.bf16.msra.mxu0 %v1646
        %1918 = vmatprep.subr.bf16.mxu0 0
        %1919 = vmatpush1.bf16.msra.mxu0 %v1643
        %1920 = vmatprep.subr.bf16.mxu0 0
        %1921 = vmatpush1.bf16.msra.mxu0 %v1640
        %1922 = vmatprep.subr.bf16.mxu0 0
        %1923 = vmatpush1.bf16.msra.mxu0 %v1637
        %1924 = vmatprep.subr.bf16.mxu0 0
        %1925 = vmatpush1.bf16.msra.mxu0 %v1634
        %1926 = vmatprep.subr.bf16.mxu0 0
        %1927 = vmatpush2.bf16.msra.mxu0 %v1679
        %1928 = vmatprep.subr.bf16.mxu0 0
        %1929 = vmatpush2.bf16.msra.mxu0 %v1676
        %1930 = vmatprep.subr.bf16.mxu0 0
        %1931 = vmatpush2.bf16.msra.mxu0 %v1673
        %1932 = vmatprep.subr.bf16.mxu0 0
        %1933 = vmatpush2.bf16.msra.mxu0 %v1670
        %1934 = vmatprep.subr.bf16.mxu0 0
        %1935 = vmatpush2.bf16.msra.mxu0 %v1667
        %1936 = vmatprep.subr.bf16.mxu0 0
        %1937 = vmatpush2.bf16.msra.mxu0 %v1664
        %1938 = vmatprep.subr.bf16.mxu0 0
        %1939 = vmatpush2.bf16.msra.mxu0 %v1661
        %1940 = vmatprep.subr.bf16.mxu0 0
        %1941 = vmatpush2.bf16.msra.mxu0 %v1658
        %1942 = vmatprep.mubr.bf16.mxu0 %v1181
        %1943 = vmatmul.mubr.bf16.gmra.mxu0 %v1180
        %v1944 = vpop.f32.mrf.mxu0
        %v1945 = vadd.f32 0.0, %v1944
        %v1946 = vpop.f32.mrf.mxu0
        %v1947 = vpop.f32.mrf.mxu0
        %v1948 = vadd.f32 0.0, %v1947
        %v1949 = vpop.f32.mrf.mxu0
        %1950 = vdwg.mxu0
        %1951 = vmatprep.subr.bf16.mxu0 0
        %1952 = vmatpush1.bf16.msra.mxu0 %v1703
        %1953 = vmatprep.subr.bf16.mxu0 0
        %1954 = vmatpush1.bf16.msra.mxu0 %v1700
        %1955 = vmatprep.subr.bf16.mxu0 0
        %1956 = vmatpush1.bf16.msra.mxu0 %v1697
        %1957 = vmatprep.subr.bf16.mxu0 0
        %1958 = vmatpush1.bf16.msra.mxu0 %v1694
        %1959 = vmatprep.subr.bf16.mxu0 0
        %1960 = vmatpush1.bf16.msra.mxu0 %v1691
        %1961 = vmatprep.subr.bf16.mxu0 0
        %1962 = vmatpush1.bf16.msra.mxu0 %v1688
        %1963 = vmatprep.subr.bf16.mxu0 0
        %1964 = vmatpush1.bf16.msra.mxu0 %v1685
        %1965 = vmatprep.subr.bf16.mxu0 0
        %1966 = vmatpush1.bf16.msra.mxu0 %v1682
        %1967 = vmatprep.subr.bf16.mxu0 0
        %1968 = vmatpush2.bf16.msra.mxu0 %v1727
        %1969 = vmatprep.subr.bf16.mxu0 0
        %1970 = vmatpush2.bf16.msra.mxu0 %v1724
        %1971 = vmatprep.subr.bf16.mxu0 0
        %1972 = vmatpush2.bf16.msra.mxu0 %v1721
        %1973 = vmatprep.subr.bf16.mxu0 0
        %1974 = vmatpush2.bf16.msra.mxu0 %v1718
        %1975 = vmatprep.subr.bf16.mxu0 0
        %1976 = vmatpush2.bf16.msra.mxu0 %v1715
        %1977 = vmatprep.subr.bf16.mxu0 0
        %1978 = vmatpush2.bf16.msra.mxu0 %v1712
        %1979 = vmatprep.subr.bf16.mxu0 0
        %1980 = vmatpush2.bf16.msra.mxu0 %v1709
        %1981 = vmatprep.subr.bf16.mxu0 0
        %1982 = vmatpush2.bf16.msra.mxu0 %v1706
        %1983 = vmatprep.mubr.bf16.mxu0 %v1183
        %1984 = vmatmul.mubr.bf16.gmra.mxu0 %v1182
        %v1985 = vpop.f32.mrf.mxu0
        %v1986 = vadd.f32 %v1945, %v1985
        %v1987 = vpop.f32.mrf.mxu0
        %v1988 = vpop.f32.mrf.mxu0
        %v1989 = vadd.f32 %v1948, %v1988
        %v1990 = vpop.f32.mrf.mxu0
        %1991 = vdwg.mxu0
        %v1992 = vadd.f32 %v1174, %v1902
        %v1993 = vadd.f32 %v1175, %v1904
        %v1994 = vadd.f32 %v1176, %v1986
        %v1995 = vadd.f32 %v1177, %v1906
        %v1996 = vadd.f32 %v1178, %v1908
        %v1997 = vadd.f32 %v1179, %v1989
        %1998 = vst [vmem:[#allocation2] sm:$0xff] %v1992
        %1999 = vst [vmem:[#allocation2 + $0x8] sm:$0xff] %v1993
        %2000 = vst [vmem:[#allocation2 + $0x10] sm:$0xff] %v1994
        %2001 = vst [vmem:[#allocation2 + $0x18] sm:$0xff] %v1995
        %2002 = vst [vmem:[#allocation2 + $0x20] sm:$0xff] %v1996
        %2003 = vst [vmem:[#allocation2 + $0x28] sm:$0xff] %v1997
        %p2004 = scmp.eq.s32.totalorder %s29, 2
        // Predicated region
        $region65: #{tpu_custom_call.1} parent=39 // pred_check
          %p2005 = pneg %p2004
        $region66: #{tpu_custom_call.1} parent=39 // pred_check_branch
          %2007 = sbr.rel (%p2005) target = $region68
        $region67: #{tpu_custom_call.1} parent=39 // pred_region
          %v2008 = vld [vmem:[#allocation2] sm:$0xff]
          %v2009 = vld [vmem:[#allocation2 + $0x8] sm:$0xff]
          %v2010 = vld [vmem:[#allocation2 + $0x10] sm:$0xff]
          %v2011 = vld [vmem:[#allocation2 + $0x18] sm:$0xff]
          %v2012 = vld [vmem:[#allocation2 + $0x20] sm:$0xff]
          %v2013 = vld [vmem:[#allocation2 + $0x28] sm:$0xff]
          %v2014 = vld [vmem:[#allocation11] sm:$0x7]
          %v2016 = vlaneseq
          %v2017 = vshrl.u32 %v2016, 7
          %v2018 = vsub.s32 0, %v2017
          %v2019 = vrot.slane %v2014, %v2018
          %v2020 = vlaneseq
          %v2021 = vshrl.u32 %v2020, 7
          %v2022 = vsub.s32 1, %v2021
          %v2023 = vrot.slane %v2014, %v2022
          %v2024 = vlaneseq
          %v2025 = vshrl.u32 %v2024, 7
          %v2026 = vsub.s32 2, %v2025
          %v2027 = vrot.slane %v2014, %v2026
          %v2031 = vadd.f32 %v2008, %v2019
          %v2032 = vadd.f32 %v2009, %v2023
          %v2033 = vadd.f32 %v2010, %v2027
          %v2034 = vadd.f32 %v2011, %v2019
          %v2035 = vadd.f32 %v2012, %v2023
          %v2036 = vadd.f32 %v2013, %v2027
          %2037 = vst [vmem:[#allocation12] sm:$0xff] %v2031
          %2038 = vst [vmem:[#allocation12 + $0x8] sm:$0xff] %v2032
          %2039 = vst [vmem:[#allocation12 + $0x10] sm:$0xff] %v2033
          %2040 = vst [vmem:[#allocation12 + $0x18] sm:$0xff] %v2034
          %2041 = vst [vmem:[#allocation12 + $0x20] sm:$0xff] %v2035
          %2042 = vst [vmem:[#allocation12 + $0x28] sm:$0xff] %v2036
        $region68: #{tpu_custom_call.1} parent=39 // pred_fallthru
          _
        // Predicated region
        $region69: #{tpu_custom_call.1} parent=39 // pred_check
          %p2043 = pneg %p179
        $region70: #{tpu_custom_call.1} parent=39 // pred_check_branch
          %2045 = sbr.rel (%p2043) target = $region72
        $region71: #{tpu_custom_call.1} parent=39 // pred_region
          %s2046 = smul.u32 2, %s28
          %s2048 = ssub.s32 768, 768
          %2049 = vsyncadd [#allocation5], %s2048
          %s2050 = smul.addr %s2046, 3
          %s2051 = smul.addr %s2050, 128
          %s2052 = scalar_lea.hbm %s5, %s2051
          %s2053 = sshll.u32 [#allocation12], 4
          %s2054 = int_to_ptr.vmem [resolvable:$true] %s2053
          %2059 = dma.vmem_to_hbm [thread:$0]  %s2054, 768, %s2052, [#allocation5], 384, 384, 24
        $region72: #{tpu_custom_call.1} parent=39 // pred_fallthru
          _
        // Predicated region
        $region73: #{tpu_custom_call.1} parent=39 // pred_check
          %p2060 = pneg %p179
        $region74: #{tpu_custom_call.1} parent=39 // pred_check_branch
          %2062 = sbr.rel (%p2060) target = $region76
        $region75: #{tpu_custom_call.1} parent=39 // pred_region
          %2063 = dma.done [#allocation5], 768
        $region76: #{tpu_custom_call.1} parent=39 // pred_fallthru
          _
      $region40: #{tpu_custom_call.1} parent=5 // pred_fallthru
        _
      %p2064 = scmp.le.s32.totalorder 2, %s19
      // Predicated region
      $region77: #{tpu_custom_call.1} parent=5 // pred_check
        %p2065 = pneg %p2064
      $region78: #{tpu_custom_call.1} parent=5 // pred_check_branch
        %2067 = sbr.rel (%p2065) target = $region80
      $region79: #{tpu_custom_call.1} parent=5 // pred_region
        %s2068 = ssub.s32 %s19, 2
      $region80: #{tpu_custom_call.1} parent=5 // pred_fallthru
        _
    $region6: #{tpu_custom_call.1} parent=1 // loop_footer
      %s23 = sadd.s32 1, %s19
    $region7: #{tpu_custom_call.1} parent=1 // loop_footer_branch
      %18 = sbr.rel target = $region3
    $region8: #{tpu_custom_call.1} parent=1 // loop_exit
      _
    %2069 = vsyncpa [#allocation4], 1
    %s2070 = scalar_lea.sflag [#allocation4], 1
    %2071 = vsyncpa %s2070, 1
    %2072 = vsyncpa [#allocation7], 1
    %s2073 = scalar_lea.sflag [#allocation7], 1
    %2074 = vsyncpa %s2073, 1
    %2075 = vsyncpa [#allocation10], 1
    %s2076 = scalar_lea.sflag [#allocation10], 1
    %2077 = vsyncpa %s2076, 1
    %2078 = vsyncpa [#allocation5], 1
    %s2079 = scalar_lea.sflag [#allocation5], 1
    %2080 = vsyncpa %s2079, 1

</llo_original>
